<compile_context>
chip_gen: v7x
topology: tpu7x:2x2x1
jax: 0.10.0
libtpu: 0.0.40
codegen_flags: <defaults>
</compile_context>

<pallas_src>
import functools

import jax
import jax.numpy as jnp
import numpy as np
from jax import lax
from jax.experimental import pallas as pl
from jax.experimental.pallas import tpu as pltpu

NUM_HEAD = 4
HIDDEN = 32
MID = 64
EPS = 1e-6
NEG_INF = -1e9


# ----------------------------- in-kernel helpers -----------------------------
def _layernorm(v, g, b):
    mu = jnp.mean(v, axis=-1, keepdims=True)
    var = jnp.mean((v - mu) ** 2, axis=-1, keepdims=True)
    return g * (v - mu) * lax.rsqrt(var + EPS) + b


def _heads_to_rows(t, col0, num_head, dk):
    """Take head blocks t[:, col0+h*dk : col0+(h+1)*dk] and stack them along
    rows -> (num_head * R, dk), head-major.  Uses static lane slices + a
    sublane-axis concat (no general reshape)."""
    return jnp.concatenate(
        [t[:, col0 + h * dk: col0 + (h + 1) * dk] for h in range(num_head)],
        axis=0)


def _rows_to_heads(t, num_head, rows):
    """Inverse of _heads_to_rows: (num_head*rows, dk) -> (rows, num_head*dk)."""
    return jnp.concatenate(
        [t[h * rows:(h + 1) * rows, :] for h in range(num_head)], axis=1)


def _flat_attention(q_r, k_r, v_r, bias):
    """Single-matmul attention over head-flattened rows.

    q_r: (Hq, dk), k_r/v_r: (Hk, dk), bias: (Hq, Hk) additive (0 / -1e9)
    encoding head-block, batch-block, causal and key-padding structure.
    """
    s = lax.dot_general(q_r, k_r, (((1,), (1,)), ((), ())),
                        preferred_element_type=jnp.float32)
    s = s + bias
    s = s - jnp.max(s, axis=-1, keepdims=True)
    p = jnp.exp(s)
    denom = jnp.sum(p, axis=-1, keepdims=True)
    p = p * pl.reciprocal(denom, approx=True)
    return jnp.dot(p, v_r, preferred_element_type=jnp.float32)


# --------------------------------- kernel ------------------------------------
def decoder_layer_kernel(x_ref, mem_ref,
                         w_qkv_s_ref, b_qkv_s_ref, w_o_s_ref, b_o_s_ref,
                         w_q_c_ref, b_q_c_ref, w_kv_c_ref, b_kv_c_ref,
                         w_o_c_ref, b_o_c_ref,
                         w_ff1_ref, b_ff1_ref, w_ff2_ref, b_ff2_ref,
                         ln_g_ref, ln_b_ref,
                         self_bias_ref, cross_bias_ref,
                         out_ref, *, num_head):
    x = x_ref[...].astype(jnp.float32)        # (Rq, H)   Rq = B*S
    mem = mem_ref[...].astype(jnp.float32)    # (Rk, H)   Rk = B*Sm_padded

    rq, hdim = x.shape
    dk = hdim // num_head
    scale = jnp.float32(1.0 / np.sqrt(dk))

    ln_g = ln_g_ref[...]
    ln_b = ln_b_ref[...]

    # ---- 1) causal multi-head self-attention + residual ---------------------
    h0 = _layernorm(x, ln_g[0:1, :], ln_b[0:1, :])
    qkv = (jnp.dot(h0, w_qkv_s_ref[...], preferred_element_type=jnp.float32)
           + b_qkv_s_ref[...])                                  # (Rq, 3H)
    q_r = _heads_to_rows(qkv, 0, num_head, dk) * scale          # (nh*Rq, dk)
    k_r = _heads_to_rows(qkv, hdim, num_head, dk)
    v_r = _heads_to_rows(qkv, 2 * hdim, num_head, dk)
    attn = _flat_attention(q_r, k_r, v_r, self_bias_ref[...])   # (nh*Rq, dk)
    attn = _rows_to_heads(attn, num_head, rq)                   # (Rq, H)
    x = x + (jnp.dot(attn, w_o_s_ref[...], preferred_element_type=jnp.float32)
             + b_o_s_ref[...])

    # ---- 2) multi-head cross-attention (mask=None) + residual ---------------
    h1 = _layernorm(x, ln_g[1:2, :], ln_b[1:2, :])
    q = (jnp.dot(h1, w_q_c_ref[...], preferred_element_type=jnp.float32)
         + b_q_c_ref[...])                                      # (Rq, H)
    kv = (jnp.dot(mem, w_kv_c_ref[...], preferred_element_type=jnp.float32)
          + b_kv_c_ref[...])                                    # (Rk, 2H)
    q_r = _heads_to_rows(q, 0, num_head, dk) * scale            # (nh*Rq, dk)
    k_r = _heads_to_rows(kv, 0, num_head, dk)                   # (nh*Rk, dk)
    v_r = _heads_to_rows(kv, hdim, num_head, dk)
    attn = _flat_attention(q_r, k_r, v_r, cross_bias_ref[...])
    attn = _rows_to_heads(attn, num_head, rq)
    x = x + (jnp.dot(attn, w_o_c_ref[...], preferred_element_type=jnp.float32)
             + b_o_c_ref[...])

    # ---- 3) feed-forward + residual ------------------------------------------
    h2 = _layernorm(x, ln_g[2:3, :], ln_b[2:3, :])
    ff = jnp.maximum(
        jnp.dot(h2, w_ff1_ref[...], preferred_element_type=jnp.float32)
        + b_ff1_ref[...], 0.0)
    ff = (jnp.dot(ff, w_ff2_ref[...], preferred_element_type=jnp.float32)
          + b_ff2_ref[...])
    # TODO(synk): nn.Dropout layers are identity here (eval mode / p=0).
    out_ref[...] = (x + ff).astype(out_ref.dtype)


# --------------------------- mask construction --------------------------------
def _build_biases(B, S, Sm, Sm_p, nh):
    """Additive score biases (0 valid / -1e9 invalid) for the head-flattened
    layout: row r = h*(B*S) + b*S + s ; key col r = h*(B*Sm_p) + b*Sm_p + sm."""
    rq = np.arange(nh * B * S)
    hq, bq, sq = rq // (B * S), (rq // S) % B, rq % S

    # self-attention: same head, same batch, causal
    valid_s = ((hq[:, None] == hq[None, :]) &
               (bq[:, None] == bq[None, :]) &
               (sq[None, :] <= sq[:, None]))
    self_bias = np.where(valid_s, 0.0, NEG_INF).astype(np.float32)

    # cross-attention: same head, same batch, real (non-padded) memory rows
    rk = np.arange(nh * B * Sm_p)
    hk, bk, sk = rk // (B * Sm_p), (rk // Sm_p) % B, rk % Sm_p
    valid_c = ((hq[:, None] == hk[None, :]) &
               (bq[:, None] == bk[None, :]) &
               (sk[None, :] < Sm))
    cross_bias = np.where(valid_c, 0.0, NEG_INF).astype(np.float32)
    return jnp.asarray(self_bias), jnp.asarray(cross_bias)


def _zero_idx(ndim, i):
    return (0,) * ndim


# -------------------------------- wrapper -------------------------------------
def decoder_layer(x, mem, params):
    (w_self, b_self, w_cross, b_cross,
     w_ff1, b_ff1, w_ff2, b_ff2, ln_g, ln_b) = params
    B, S, H = x.shape
    _, Sm, _ = mem.shape
    nh = NUM_HEAD

    # Pad the memory sequence so the per-head flattened KV row blocks stay
    # 8-row (sublane) aligned; padded keys are masked out by cross_bias.
    Sm_p = int(-(-Sm // 8) * 8)
    mem_p = jnp.pad(mem, ((0, 0), (0, Sm_p - Sm), (0, 0)))

    x2 = x.reshape(B * S, H)
    mem2 = mem_p.reshape(B * Sm_p, H)

    # Wrapper-side weight fusion (layout plumbing only, no compute hoisted).
    w_qkv_s = jnp.concatenate([w_self[0], w_self[1], w_self[2]], axis=1)   # (H,3H)
    b_qkv_s = jnp.concatenate([b_self[0], b_self[1], b_self[2]])[None, :]  # (1,3H)
    w_o_s, b_o_s = w_self[3], b_self[3][None, :]
    w_q_c, b_q_c = w_cross[0], b_cross[0][None, :]
    w_kv_c = jnp.concatenate([w_cross[1], w_cross[2]], axis=1)             # (H,2H)
    b_kv_c = jnp.concatenate([b_cross[1], b_cross[2]])[None, :]            # (1,2H)
    w_o_c, b_o_c = w_cross[3], b_cross[3][None, :]
    b_ff1_2 = b_ff1.reshape(1, -1)
    b_ff2_2 = b_ff2.reshape(1, -1)

    self_bias, cross_bias = _build_biases(B, S, Sm, Sm_p, nh)

    args = (x2, mem2,
            w_qkv_s, b_qkv_s, w_o_s, b_o_s,
            w_q_c, b_q_c, w_kv_c, b_kv_c, w_o_c, b_o_c,
            w_ff1, b_ff1_2, w_ff2, b_ff2_2,
            ln_g, ln_b,
            self_bias, cross_bias)

    in_specs = [pl.BlockSpec(a.shape, functools.partial(_zero_idx, a.ndim))
                for a in args]
    out_spec = pl.BlockSpec((B * S, H), functools.partial(_zero_idx, 2))

    out2 = pl.pallas_call(
        functools.partial(decoder_layer_kernel, num_head=nh),
        out_shape=jax.ShapeDtypeStruct((B * S, H), x.dtype),
        grid=(1,),                       # whole batch in one grid step
        in_specs=in_specs,
        out_specs=out_spec,
        compiler_params=pltpu.CompilerParams(
            dimension_semantics=("arbitrary",)),
    )(*args)
    return out2.reshape(B, S, H)


# --------------------------- pure-JAX reference -------------------------------
def _ref_decoder_layer(x, mem, params):
    (w_self, b_self, w_cross, b_cross,
     w_ff1, b_ff1, w_ff2, b_ff2, ln_g, ln_b) = params

    def ln(v, g, b):
        mu = jnp.mean(v, -1, keepdims=True)
        var = jnp.mean((v - mu) ** 2, -1, keepdims=True)
        return g * (v - mu) / jnp.sqrt(var + EPS) + b

    def mha(qx, kvx, w, b, causal):
        Bq, Sq, H = qx.shape
        Sk = kvx.shape[1]
        dk = H // NUM_HEAD
        q = qx @ w[0] + b[0]
        k = kvx @ w[1] + b[1]
        v = kvx @ w[2] + b[2]
        q = q.reshape(Bq, Sq, NUM_HEAD, dk).transpose(0, 2, 1, 3)
        k = k.reshape(Bq, Sk, NUM_HEAD, dk).transpose(0, 2, 1, 3)
        v = v.reshape(Bq, Sk, NUM_HEAD, dk).transpose(0, 2, 1, 3)
        s = jnp.einsum('bhqd,bhkd->bhqk', q, k) / jnp.sqrt(jnp.float32(dk))
        if causal:
            m = jnp.tril(jnp.ones((Sq, Sk), bool))
            s = jnp.where(m[None, None], s, NEG_INF)
        p = jax.nn.softmax(s, axis=-1)
        o = jnp.einsum('bhqk,bhkd->bhqd', p, v).transpose(0, 2, 1, 3)
        o = o.reshape(Bq, Sq, H)
        return o @ w[3] + b[3]

    h = ln(x, ln_g[0], ln_b[0])
    x = x + mha(h, h, w_self, b_self, True)
    h = ln(x, ln_g[1], ln_b[1])
    x = x + mha(h, mem, w_cross, b_cross, False)
    h = ln(x, ln_g[2], ln_b[2])
    ff = jnp.maximum(h @ w_ff1 + b_ff1, 0.0) @ w_ff2 + b_ff2
    return x + ff


# ----------------------------------- main -------------------------------------
if __name__ == "__main__":
    B, S, Sm, H, M = 2, 8, 10, HIDDEN, MID
    key = jax.random.PRNGKey(0)
    ks = jax.random.split(key, 12)

    x = jax.random.normal(ks[0], (B, S, H), jnp.float32)
    mem = jax.random.normal(ks[1], (B, Sm, H), jnp.float32)

    scale = 0.1
    w_self = scale * jax.random.normal(ks[2], (4, H, H), jnp.float32)
    b_self = scale * jax.random.normal(ks[3], (4, H), jnp.float32)
    w_cross = scale * jax.random.normal(ks[4], (4, H, H), jnp.float32)
    b_cross = scale * jax.random.normal(ks[5], (4, H), jnp.float32)
    w_ff1 = scale * jax.random.normal(ks[6], (H, M), jnp.float32)
    b_ff1 = scale * jax.random.normal(ks[7], (1, M), jnp.float32)
    w_ff2 = scale * jax.random.normal(ks[8], (M, H), jnp.float32)
    b_ff2 = scale * jax.random.normal(ks[9], (1, H), jnp.float32)
    ln_g = jnp.ones((3, H), jnp.float32) + 0.05 * jax.random.normal(ks[10], (3, H))
    ln_b = 0.05 * jax.random.normal(ks[11], (3, H), jnp.float32)

    params = (w_self, b_self, w_cross, b_cross,
              w_ff1, b_ff1, w_ff2, b_ff2, ln_g, ln_b)

    out = decoder_layer(x, mem, params)
    out = jax.block_until_ready(out)

    ref = _ref_decoder_layer(x, mem, params)
    np.testing.assert_allclose(np.asarray(out), np.asarray(ref),
                               rtol=2e-3, atol=2e-3)
    print("KERNEL_OK")
</pallas_src>

<mosaic_0001>
module attributes {stable_mosaic.version = 11 : i64} {
  func.func @decoder_layer_kernel(%arg0: i32, %arg1: memref<16x32xf32, #tpu.memory_space<vmem>>, %arg2: memref<32x32xf32, #tpu.memory_space<vmem>>, %arg3: memref<32x96xf32, #tpu.memory_space<vmem>>, %arg4: memref<1x96xf32, #tpu.memory_space<vmem>>, %arg5: memref<32x32xf32, #tpu.memory_space<vmem>>, %arg6: memref<1x32xf32, #tpu.memory_space<vmem>>, %arg7: memref<32x32xf32, #tpu.memory_space<vmem>>, %arg8: memref<1x32xf32, #tpu.memory_space<vmem>>, %arg9: memref<32x64xf32, #tpu.memory_space<vmem>>, %arg10: memref<1x64xf32, #tpu.memory_space<vmem>>, %arg11: memref<32x32xf32, #tpu.memory_space<vmem>>, %arg12: memref<1x32xf32, #tpu.memory_space<vmem>>, %arg13: memref<32x64xf32, #tpu.memory_space<vmem>>, %arg14: memref<1x64xf32, #tpu.memory_space<vmem>>, %arg15: memref<64x32xf32, #tpu.memory_space<vmem>>, %arg16: memref<1x32xf32, #tpu.memory_space<vmem>>, %arg17: memref<3x32xf32, #tpu.memory_space<vmem>>, %arg18: memref<3x32xf32, #tpu.memory_space<vmem>>, %arg19: memref<64x64xf32, #tpu.memory_space<vmem>>, %arg20: memref<64x128xf32, #tpu.memory_space<vmem>>, %arg21: memref<16x32xf32, #tpu.memory_space<vmem>>) attributes {dimension_semantics = [#tpu.dimension_semantics<arbitrary>], iteration_bounds = array<i64: 1>, scalar_prefetch = 0 : i64, scratch_operands = 0 : i64, tpu.core_type = #tpu.core_type<tc>, window_params = [{pipeline_mode = #tpu.pipeline_mode<synchronous>, transform_indices = @transform_0, window_bounds = array<i64: 16, 32>}, {pipeline_mode = #tpu.pipeline_mode<synchronous>, transform_indices = @transform_1, window_bounds = array<i64: 32, 32>}, {pipeline_mode = #tpu.pipeline_mode<synchronous>, transform_indices = @transform_2, window_bounds = array<i64: 32, 96>}, {pipeline_mode = #tpu.pipeline_mode<synchronous>, transform_indices = @transform_3, window_bounds = array<i64: 1, 96>}, {pipeline_mode = #tpu.pipeline_mode<synchronous>, transform_indices = @transform_4, window_bounds = array<i64: 32, 32>}, {pipeline_mode = #tpu.pipeline_mode<synchronous>, transform_indices = @transform_5, window_bounds = array<i64: 1, 32>}, {pipeline_mode = #tpu.pipeline_mode<synchronous>, transform_indices = @transform_6, window_bounds = array<i64: 32, 32>}, {pipeline_mode = #tpu.pipeline_mode<synchronous>, transform_indices = @transform_7, window_bounds = array<i64: 1, 32>}, {pipeline_mode = #tpu.pipeline_mode<synchronous>, transform_indices = @transform_8, window_bounds = array<i64: 32, 64>}, {pipeline_mode = #tpu.pipeline_mode<synchronous>, transform_indices = @transform_9, window_bounds = array<i64: 1, 64>}, {pipeline_mode = #tpu.pipeline_mode<synchronous>, transform_indices = @transform_10, window_bounds = array<i64: 32, 32>}, {pipeline_mode = #tpu.pipeline_mode<synchronous>, transform_indices = @transform_11, window_bounds = array<i64: 1, 32>}, {pipeline_mode = #tpu.pipeline_mode<synchronous>, transform_indices = @transform_12, window_bounds = array<i64: 32, 64>}, {pipeline_mode = #tpu.pipeline_mode<synchronous>, transform_indices = @transform_13, window_bounds = array<i64: 1, 64>}, {pipeline_mode = #tpu.pipeline_mode<synchronous>, transform_indices = @transform_14, window_bounds = array<i64: 64, 32>}, {pipeline_mode = #tpu.pipeline_mode<synchronous>, transform_indices = @transform_15, window_bounds = array<i64: 1, 32>}, {pipeline_mode = #tpu.pipeline_mode<synchronous>, transform_indices = @transform_16, window_bounds = array<i64: 3, 32>}, {pipeline_mode = #tpu.pipeline_mode<synchronous>, transform_indices = @transform_17, window_bounds = array<i64: 3, 32>}, {pipeline_mode = #tpu.pipeline_mode<synchronous>, transform_indices = @transform_18, window_bounds = array<i64: 64, 64>}, {pipeline_mode = #tpu.pipeline_mode<synchronous>, transform_indices = @transform_19, window_bounds = array<i64: 64, 128>}, {pipeline_mode = #tpu.pipeline_mode<synchronous>, transform_indices = @transform_20, window_bounds = array<i64: 16, 32>}]} {
    %c0 = arith.constant 0 : index
    %c0_0 = arith.constant 0 : index
    %0 = vector.load %arg1[%c0, %c0_0] : memref<16x32xf32, #tpu.memory_space<vmem>>, vector<16x32xf32>
    %c0_1 = arith.constant 0 : index
    %c0_2 = arith.constant 0 : index
    %1 = vector.load %arg2[%c0_1, %c0_2] : memref<32x32xf32, #tpu.memory_space<vmem>>, vector<32x32xf32>
    %c0_3 = arith.constant 0 : index
    %c0_4 = arith.constant 0 : index
    %2 = vector.load %arg17[%c0_3, %c0_4] : memref<3x32xf32, #tpu.memory_space<vmem>>, vector<3x32xf32>
    %c0_5 = arith.constant 0 : index
    %c0_6 = arith.constant 0 : index
    %3 = vector.load %arg18[%c0_5, %c0_6] : memref<3x32xf32, #tpu.memory_space<vmem>>, vector<3x32xf32>
    %4 = vector.extract_strided_slice %2 {offsets = [0, 0], sizes = [1, 32], strides = [1, 1]} : vector<3x32xf32> to vector<1x32xf32>
    %5 = vector.extract_strided_slice %3 {offsets = [0, 0], sizes = [1, 32], strides = [1, 1]} : vector<3x32xf32> to vector<1x32xf32>
    %cst = arith.constant dense<0.000000e+00> : vector<16xf32>
    %6 = vector.multi_reduction <add>, %0, %cst [1] : vector<16x32xf32> to vector<16xf32>
    %7 = vector.shape_cast %6 : vector<16xf32> to vector<16x1xf32>
    %cst_7 = arith.constant 3.200000e+01 : f32
    %8 = vector.broadcast %cst_7 : f32 to vector<16x1xf32>
    %9 = arith.divf %7, %8 : vector<16x1xf32>
    %10 = vector.broadcast %9 : vector<16x1xf32> to vector<16x32xf32>
    %11 = arith.subf %0, %10 : vector<16x32xf32>
    %12 = arith.mulf %11, %11 : vector<16x32xf32>
    %cst_8 = arith.constant dense<0.000000e+00> : vector<16xf32>
    %13 = vector.multi_reduction <add>, %12, %cst_8 [1] : vector<16x32xf32> to vector<16xf32>
    %14 = vector.shape_cast %13 : vector<16xf32> to vector<16x1xf32>
    %cst_9 = arith.constant 3.200000e+01 : f32
    %15 = vector.broadcast %cst_9 : f32 to vector<16x1xf32>
    %16 = arith.divf %14, %15 : vector<16x1xf32>
    %17 = vector.broadcast %9 : vector<16x1xf32> to vector<16x32xf32>
    %18 = arith.subf %0, %17 : vector<16x32xf32>
    %19 = vector.broadcast %4 : vector<1x32xf32> to vector<16x32xf32>
    %20 = arith.mulf %19, %18 : vector<16x32xf32>
    %cst_10 = arith.constant 9.99999997E-7 : f32
    %21 = vector.broadcast %cst_10 : f32 to vector<16x1xf32>
    %22 = arith.addf %16, %21 : vector<16x1xf32>
    %23 = math.rsqrt %22 : vector<16x1xf32>
    %24 = vector.broadcast %23 : vector<16x1xf32> to vector<16x32xf32>
    %25 = arith.mulf %20, %24 : vector<16x32xf32>
    %26 = vector.broadcast %5 : vector<1x32xf32> to vector<16x32xf32>
    %27 = arith.addf %25, %26 : vector<16x32xf32>
    %c0_11 = arith.constant 0 : index
    %c0_12 = arith.constant 0 : index
    %28 = vector.load %arg3[%c0_11, %c0_12] : memref<32x96xf32, #tpu.memory_space<vmem>>, vector<32x96xf32>
    %cst_13 = arith.constant dense<0.000000e+00> : vector<16x96xf32>
    %29 = tpu.matmul %27, %28, %cst_13 {dimension_numbers = #tpu.dot_dimension_numbers<[1], [0], [0], [1], [0, 0, 1, 1], [], []>} : vector<16x32xf32>, vector<32x96xf32>, vector<16x96xf32> -> vector<16x96xf32>
    %c0_14 = arith.constant 0 : index
    %c0_15 = arith.constant 0 : index
    %30 = vector.load %arg4[%c0_14, %c0_15] : memref<1x96xf32, #tpu.memory_space<vmem>>, vector<1x96xf32>
    %31 = vector.broadcast %30 : vector<1x96xf32> to vector<16x96xf32>
    %32 = arith.addf %29, %31 : vector<16x96xf32>
    %33 = vector.extract_strided_slice %32 {offsets = [0, 0], sizes = [16, 8], strides = [1, 1]} : vector<16x96xf32> to vector<16x8xf32>
    %34 = vector.extract_strided_slice %32 {offsets = [0, 8], sizes = [16, 8], strides = [1, 1]} : vector<16x96xf32> to vector<16x8xf32>
    %35 = vector.extract_strided_slice %32 {offsets = [0, 16], sizes = [16, 8], strides = [1, 1]} : vector<16x96xf32> to vector<16x8xf32>
    %36 = vector.extract_strided_slice %32 {offsets = [0, 24], sizes = [16, 8], strides = [1, 1]} : vector<16x96xf32> to vector<16x8xf32>
    %37 = tpu.concatenate %33, %34, %35, %36 in 0 : vector<16x8xf32>, vector<16x8xf32>, vector<16x8xf32>, vector<16x8xf32> -> vector<64x8xf32>
    %cst_16 = arith.constant 0.353553385 : f32
    %38 = vector.broadcast %cst_16 : f32 to vector<64x8xf32>
    %39 = arith.mulf %37, %38 : vector<64x8xf32>
    %40 = vector.extract_strided_slice %32 {offsets = [0, 32], sizes = [16, 8], strides = [1, 1]} : vector<16x96xf32> to vector<16x8xf32>
    %41 = vector.extract_strided_slice %32 {offsets = [0, 40], sizes = [16, 8], strides = [1, 1]} : vector<16x96xf32> to vector<16x8xf32>
    %42 = vector.extract_strided_slice %32 {offsets = [0, 48], sizes = [16, 8], strides = [1, 1]} : vector<16x96xf32> to vector<16x8xf32>
    %43 = vector.extract_strided_slice %32 {offsets = [0, 56], sizes = [16, 8], strides = [1, 1]} : vector<16x96xf32> to vector<16x8xf32>
    %44 = tpu.concatenate %40, %41, %42, %43 in 0 : vector<16x8xf32>, vector<16x8xf32>, vector<16x8xf32>, vector<16x8xf32> -> vector<64x8xf32>
    %45 = vector.extract_strided_slice %32 {offsets = [0, 64], sizes = [16, 8], strides = [1, 1]} : vector<16x96xf32> to vector<16x8xf32>
    %46 = vector.extract_strided_slice %32 {offsets = [0, 72], sizes = [16, 8], strides = [1, 1]} : vector<16x96xf32> to vector<16x8xf32>
    %47 = vector.extract_strided_slice %32 {offsets = [0, 80], sizes = [16, 8], strides = [1, 1]} : vector<16x96xf32> to vector<16x8xf32>
    %48 = vector.extract_strided_slice %32 {offsets = [0, 88], sizes = [16, 8], strides = [1, 1]} : vector<16x96xf32> to vector<16x8xf32>
    %49 = tpu.concatenate %45, %46, %47, %48 in 0 : vector<16x8xf32>, vector<16x8xf32>, vector<16x8xf32>, vector<16x8xf32> -> vector<64x8xf32>
    %c0_17 = arith.constant 0 : index
    %c0_18 = arith.constant 0 : index
    %50 = vector.load %arg19[%c0_17, %c0_18] : memref<64x64xf32, #tpu.memory_space<vmem>>, vector<64x64xf32>
    %cst_19 = arith.constant dense<0.000000e+00> : vector<64x64xf32>
    %51 = tpu.matmul %39, %44, %cst_19 {dimension_numbers = #tpu.dot_dimension_numbers<[1], [1], [0], [0], [0, 0, 1, 0], [], []>} : vector<64x8xf32>, vector<64x8xf32>, vector<64x64xf32> -> vector<64x64xf32>
    %52 = arith.addf %51, %50 : vector<64x64xf32>
    %cst_20 = arith.constant dense<0xFF800000> : vector<64xf32>
    %53 = vector.multi_reduction <maximumf>, %52, %cst_20 [1] : vector<64x64xf32> to vector<64xf32>
    %54 = vector.shape_cast %53 : vector<64xf32> to vector<64x1xf32>
    %55 = vector.broadcast %54 : vector<64x1xf32> to vector<64x64xf32>
    %56 = arith.subf %52, %55 : vector<64x64xf32>
    %57 = math.exp %56 : vector<64x64xf32>
    %cst_21 = arith.constant dense<0.000000e+00> : vector<64xf32>
    %58 = vector.multi_reduction <add>, %57, %cst_21 [1] : vector<64x64xf32> to vector<64xf32>
    %59 = vector.shape_cast %58 : vector<64xf32> to vector<64x1xf32>
    %60 = tpu.reciprocal %59 {approx = true} : vector<64x1xf32> -> vector<64x1xf32>
    %61 = vector.broadcast %60 : vector<64x1xf32> to vector<64x64xf32>
    %62 = arith.mulf %57, %61 : vector<64x64xf32>
    %cst_22 = arith.constant dense<0.000000e+00> : vector<64x8xf32>
    %63 = tpu.matmul %62, %49, %cst_22 {dimension_numbers = #tpu.dot_dimension_numbers<[1], [0], [0], [1], [0, 0, 1, 1], [], []>} : vector<64x64xf32>, vector<64x8xf32>, vector<64x8xf32> -> vector<64x8xf32>
    %64 = vector.extract_strided_slice %63 {offsets = [0, 0], sizes = [16, 8], strides = [1, 1]} : vector<64x8xf32> to vector<16x8xf32>
    %65 = vector.extract_strided_slice %63 {offsets = [16, 0], sizes = [16, 8], strides = [1, 1]} : vector<64x8xf32> to vector<16x8xf32>
    %66 = vector.extract_strided_slice %63 {offsets = [32, 0], sizes = [16, 8], strides = [1, 1]} : vector<64x8xf32> to vector<16x8xf32>
    %67 = vector.extract_strided_slice %63 {offsets = [48, 0], sizes = [16, 8], strides = [1, 1]} : vector<64x8xf32> to vector<16x8xf32>
    %68 = tpu.concatenate %64, %65, %66, %67 in 1 : vector<16x8xf32>, vector<16x8xf32>, vector<16x8xf32>, vector<16x8xf32> -> vector<16x32xf32>
    %c0_23 = arith.constant 0 : index
    %c0_24 = arith.constant 0 : index
    %69 = vector.load %arg5[%c0_23, %c0_24] : memref<32x32xf32, #tpu.memory_space<vmem>>, vector<32x32xf32>
    %cst_25 = arith.constant dense<0.000000e+00> : vector<16x32xf32>
    %70 = tpu.matmul %68, %69, %cst_25 {dimension_numbers = #tpu.dot_dimension_numbers<[1], [0], [0], [1], [0, 0, 1, 1], [], []>} : vector<16x32xf32>, vector<32x32xf32>, vector<16x32xf32> -> vector<16x32xf32>
    %c0_26 = arith.constant 0 : index
    %c0_27 = arith.constant 0 : index
    %71 = vector.load %arg6[%c0_26, %c0_27] : memref<1x32xf32, #tpu.memory_space<vmem>>, vector<1x32xf32>
    %72 = vector.broadcast %71 : vector<1x32xf32> to vector<16x32xf32>
    %73 = arith.addf %70, %72 : vector<16x32xf32>
    %74 = arith.addf %0, %73 : vector<16x32xf32>
    %75 = vector.extract_strided_slice %2 {offsets = [1, 0], sizes = [1, 32], strides = [1, 1]} : vector<3x32xf32> to vector<1x32xf32>
    %76 = vector.extract_strided_slice %3 {offsets = [1, 0], sizes = [1, 32], strides = [1, 1]} : vector<3x32xf32> to vector<1x32xf32>
    %cst_28 = arith.constant dense<0.000000e+00> : vector<16xf32>
    %77 = vector.multi_reduction <add>, %74, %cst_28 [1] : vector<16x32xf32> to vector<16xf32>
    %78 = vector.shape_cast %77 : vector<16xf32> to vector<16x1xf32>
    %cst_29 = arith.constant 3.200000e+01 : f32
    %79 = vector.broadcast %cst_29 : f32 to vector<16x1xf32>
    %80 = arith.divf %78, %79 : vector<16x1xf32>
    %81 = vector.broadcast %80 : vector<16x1xf32> to vector<16x32xf32>
    %82 = arith.subf %74, %81 : vector<16x32xf32>
    %83 = arith.mulf %82, %82 : vector<16x32xf32>
    %cst_30 = arith.constant dense<0.000000e+00> : vector<16xf32>
    %84 = vector.multi_reduction <add>, %83, %cst_30 [1] : vector<16x32xf32> to vector<16xf32>
    %85 = vector.shape_cast %84 : vector<16xf32> to vector<16x1xf32>
    %cst_31 = arith.constant 3.200000e+01 : f32
    %86 = vector.broadcast %cst_31 : f32 to vector<16x1xf32>
    %87 = arith.divf %85, %86 : vector<16x1xf32>
    %88 = vector.broadcast %80 : vector<16x1xf32> to vector<16x32xf32>
    %89 = arith.subf %74, %88 : vector<16x32xf32>
    %90 = vector.broadcast %75 : vector<1x32xf32> to vector<16x32xf32>
    %91 = arith.mulf %90, %89 : vector<16x32xf32>
    %cst_32 = arith.constant 9.99999997E-7 : f32
    %92 = vector.broadcast %cst_32 : f32 to vector<16x1xf32>
    %93 = arith.addf %87, %92 : vector<16x1xf32>
    %94 = math.rsqrt %93 : vector<16x1xf32>
    %95 = vector.broadcast %94 : vector<16x1xf32> to vector<16x32xf32>
    %96 = arith.mulf %91, %95 : vector<16x32xf32>
    %97 = vector.broadcast %76 : vector<1x32xf32> to vector<16x32xf32>
    %98 = arith.addf %96, %97 : vector<16x32xf32>
    %c0_33 = arith.constant 0 : index
    %c0_34 = arith.constant 0 : index
    %99 = vector.load %arg7[%c0_33, %c0_34] : memref<32x32xf32, #tpu.memory_space<vmem>>, vector<32x32xf32>
    %cst_35 = arith.constant dense<0.000000e+00> : vector<16x32xf32>
    %100 = tpu.matmul %98, %99, %cst_35 {dimension_numbers = #tpu.dot_dimension_numbers<[1], [0], [0], [1], [0, 0, 1, 1], [], []>} : vector<16x32xf32>, vector<32x32xf32>, vector<16x32xf32> -> vector<16x32xf32>
    %c0_36 = arith.constant 0 : index
    %c0_37 = arith.constant 0 : index
    %101 = vector.load %arg8[%c0_36, %c0_37] : memref<1x32xf32, #tpu.memory_space<vmem>>, vector<1x32xf32>
    %102 = vector.broadcast %101 : vector<1x32xf32> to vector<16x32xf32>
    %103 = arith.addf %100, %102 : vector<16x32xf32>
    %c0_38 = arith.constant 0 : index
    %c0_39 = arith.constant 0 : index
    %104 = vector.load %arg9[%c0_38, %c0_39] : memref<32x64xf32, #tpu.memory_space<vmem>>, vector<32x64xf32>
    %cst_40 = arith.constant dense<0.000000e+00> : vector<32x64xf32>
    %105 = tpu.matmul %1, %104, %cst_40 {dimension_numbers = #tpu.dot_dimension_numbers<[1], [0], [0], [1], [0, 0, 1, 1], [], []>} : vector<32x32xf32>, vector<32x64xf32>, vector<32x64xf32> -> vector<32x64xf32>
    %c0_41 = arith.constant 0 : index
    %c0_42 = arith.constant 0 : index
    %106 = vector.load %arg10[%c0_41, %c0_42] : memref<1x64xf32, #tpu.memory_space<vmem>>, vector<1x64xf32>
    %107 = vector.broadcast %106 : vector<1x64xf32> to vector<32x64xf32>
    %108 = arith.addf %105, %107 : vector<32x64xf32>
    %109 = vector.extract_strided_slice %103 {offsets = [0, 0], sizes = [16, 8], strides = [1, 1]} : vector<16x32xf32> to vector<16x8xf32>
    %110 = vector.extract_strided_slice %103 {offsets = [0, 8], sizes = [16, 8], strides = [1, 1]} : vector<16x32xf32> to vector<16x8xf32>
    %111 = vector.extract_strided_slice %103 {offsets = [0, 16], sizes = [16, 8], strides = [1, 1]} : vector<16x32xf32> to vector<16x8xf32>
    %112 = vector.extract_strided_slice %103 {offsets = [0, 24], sizes = [16, 8], strides = [1, 1]} : vector<16x32xf32> to vector<16x8xf32>
    %113 = tpu.concatenate %109, %110, %111, %112 in 0 : vector<16x8xf32>, vector<16x8xf32>, vector<16x8xf32>, vector<16x8xf32> -> vector<64x8xf32>
    %cst_43 = arith.constant 0.353553385 : f32
    %114 = vector.broadcast %cst_43 : f32 to vector<64x8xf32>
    %115 = arith.mulf %113, %114 : vector<64x8xf32>
    %116 = vector.extract_strided_slice %108 {offsets = [0, 0], sizes = [32, 8], strides = [1, 1]} : vector<32x64xf32> to vector<32x8xf32>
    %117 = vector.extract_strided_slice %108 {offsets = [0, 8], sizes = [32, 8], strides = [1, 1]} : vector<32x64xf32> to vector<32x8xf32>
    %118 = vector.extract_strided_slice %108 {offsets = [0, 16], sizes = [32, 8], strides = [1, 1]} : vector<32x64xf32> to vector<32x8xf32>
    %119 = vector.extract_strided_slice %108 {offsets = [0, 24], sizes = [32, 8], strides = [1, 1]} : vector<32x64xf32> to vector<32x8xf32>
    %120 = tpu.concatenate %116, %117, %118, %119 in 0 : vector<32x8xf32>, vector<32x8xf32>, vector<32x8xf32>, vector<32x8xf32> -> vector<128x8xf32>
    %121 = vector.extract_strided_slice %108 {offsets = [0, 32], sizes = [32, 8], strides = [1, 1]} : vector<32x64xf32> to vector<32x8xf32>
    %122 = vector.extract_strided_slice %108 {offsets = [0, 40], sizes = [32, 8], strides = [1, 1]} : vector<32x64xf32> to vector<32x8xf32>
    %123 = vector.extract_strided_slice %108 {offsets = [0, 48], sizes = [32, 8], strides = [1, 1]} : vector<32x64xf32> to vector<32x8xf32>
    %124 = vector.extract_strided_slice %108 {offsets = [0, 56], sizes = [32, 8], strides = [1, 1]} : vector<32x64xf32> to vector<32x8xf32>
    %125 = tpu.concatenate %121, %122, %123, %124 in 0 : vector<32x8xf32>, vector<32x8xf32>, vector<32x8xf32>, vector<32x8xf32> -> vector<128x8xf32>
    %c0_44 = arith.constant 0 : index
    %c0_45 = arith.constant 0 : index
    %126 = vector.load %arg20[%c0_44, %c0_45] : memref<64x128xf32, #tpu.memory_space<vmem>>, vector<64x128xf32>
    %cst_46 = arith.constant dense<0.000000e+00> : vector<64x128xf32>
    %127 = tpu.matmul %115, %120, %cst_46 {dimension_numbers = #tpu.dot_dimension_numbers<[1], [1], [0], [0], [0, 0, 1, 0], [], []>} : vector<64x8xf32>, vector<128x8xf32>, vector<64x128xf32> -> vector<64x128xf32>
    %128 = arith.addf %127, %126 : vector<64x128xf32>
    %cst_47 = arith.constant dense<0xFF800000> : vector<64xf32>
    %129 = vector.multi_reduction <maximumf>, %128, %cst_47 [1] : vector<64x128xf32> to vector<64xf32>
    %130 = vector.shape_cast %129 : vector<64xf32> to vector<64x1xf32>
    %131 = vector.broadcast %130 : vector<64x1xf32> to vector<64x128xf32>
    %132 = arith.subf %128, %131 : vector<64x128xf32>
    %133 = math.exp %132 : vector<64x128xf32>
    %cst_48 = arith.constant dense<0.000000e+00> : vector<64xf32>
    %134 = vector.multi_reduction <add>, %133, %cst_48 [1] : vector<64x128xf32> to vector<64xf32>
    %135 = vector.shape_cast %134 : vector<64xf32> to vector<64x1xf32>
    %136 = tpu.reciprocal %135 {approx = true} : vector<64x1xf32> -> vector<64x1xf32>
    %137 = vector.broadcast %136 : vector<64x1xf32> to vector<64x128xf32>
    %138 = arith.mulf %133, %137 : vector<64x128xf32>
    %cst_49 = arith.constant dense<0.000000e+00> : vector<64x8xf32>
    %139 = tpu.matmul %138, %125, %cst_49 {dimension_numbers = #tpu.dot_dimension_numbers<[1], [0], [0], [1], [0, 0, 1, 1], [], []>} : vector<64x128xf32>, vector<128x8xf32>, vector<64x8xf32> -> vector<64x8xf32>
    %140 = vector.extract_strided_slice %139 {offsets = [0, 0], sizes = [16, 8], strides = [1, 1]} : vector<64x8xf32> to vector<16x8xf32>
    %141 = vector.extract_strided_slice %139 {offsets = [16, 0], sizes = [16, 8], strides = [1, 1]} : vector<64x8xf32> to vector<16x8xf32>
    %142 = vector.extract_strided_slice %139 {offsets = [32, 0], sizes = [16, 8], strides = [1, 1]} : vector<64x8xf32> to vector<16x8xf32>
    %143 = vector.extract_strided_slice %139 {offsets = [48, 0], sizes = [16, 8], strides = [1, 1]} : vector<64x8xf32> to vector<16x8xf32>
    %144 = tpu.concatenate %140, %141, %142, %143 in 1 : vector<16x8xf32>, vector<16x8xf32>, vector<16x8xf32>, vector<16x8xf32> -> vector<16x32xf32>
    %c0_50 = arith.constant 0 : index
    %c0_51 = arith.constant 0 : index
    %145 = vector.load %arg11[%c0_50, %c0_51] : memref<32x32xf32, #tpu.memory_space<vmem>>, vector<32x32xf32>
    %cst_52 = arith.constant dense<0.000000e+00> : vector<16x32xf32>
    %146 = tpu.matmul %144, %145, %cst_52 {dimension_numbers = #tpu.dot_dimension_numbers<[1], [0], [0], [1], [0, 0, 1, 1], [], []>} : vector<16x32xf32>, vector<32x32xf32>, vector<16x32xf32> -> vector<16x32xf32>
    %c0_53 = arith.constant 0 : index
    %c0_54 = arith.constant 0 : index
    %147 = vector.load %arg12[%c0_53, %c0_54] : memref<1x32xf32, #tpu.memory_space<vmem>>, vector<1x32xf32>
    %148 = vector.broadcast %147 : vector<1x32xf32> to vector<16x32xf32>
    %149 = arith.addf %146, %148 : vector<16x32xf32>
    %150 = arith.addf %74, %149 : vector<16x32xf32>
    %151 = vector.extract_strided_slice %2 {offsets = [2, 0], sizes = [1, 32], strides = [1, 1]} : vector<3x32xf32> to vector<1x32xf32>
    %152 = vector.extract_strided_slice %3 {offsets = [2, 0], sizes = [1, 32], strides = [1, 1]} : vector<3x32xf32> to vector<1x32xf32>
    %cst_55 = arith.constant dense<0.000000e+00> : vector<16xf32>
    %153 = vector.multi_reduction <add>, %150, %cst_55 [1] : vector<16x32xf32> to vector<16xf32>
    %154 = vector.shape_cast %153 : vector<16xf32> to vector<16x1xf32>
    %cst_56 = arith.constant 3.200000e+01 : f32
    %155 = vector.broadcast %cst_56 : f32 to vector<16x1xf32>
    %156 = arith.divf %154, %155 : vector<16x1xf32>
    %157 = vector.broadcast %156 : vector<16x1xf32> to vector<16x32xf32>
    %158 = arith.subf %150, %157 : vector<16x32xf32>
    %159 = arith.mulf %158, %158 : vector<16x32xf32>
    %cst_57 = arith.constant dense<0.000000e+00> : vector<16xf32>
    %160 = vector.multi_reduction <add>, %159, %cst_57 [1] : vector<16x32xf32> to vector<16xf32>
    %161 = vector.shape_cast %160 : vector<16xf32> to vector<16x1xf32>
    %cst_58 = arith.constant 3.200000e+01 : f32
    %162 = vector.broadcast %cst_58 : f32 to vector<16x1xf32>
    %163 = arith.divf %161, %162 : vector<16x1xf32>
    %164 = vector.broadcast %156 : vector<16x1xf32> to vector<16x32xf32>
    %165 = arith.subf %150, %164 : vector<16x32xf32>
    %166 = vector.broadcast %151 : vector<1x32xf32> to vector<16x32xf32>
    %167 = arith.mulf %166, %165 : vector<16x32xf32>
    %cst_59 = arith.constant 9.99999997E-7 : f32
    %168 = vector.broadcast %cst_59 : f32 to vector<16x1xf32>
    %169 = arith.addf %163, %168 : vector<16x1xf32>
    %170 = math.rsqrt %169 : vector<16x1xf32>
    %171 = vector.broadcast %170 : vector<16x1xf32> to vector<16x32xf32>
    %172 = arith.mulf %167, %171 : vector<16x32xf32>
    %173 = vector.broadcast %152 : vector<1x32xf32> to vector<16x32xf32>
    %174 = arith.addf %172, %173 : vector<16x32xf32>
    %c0_60 = arith.constant 0 : index
    %c0_61 = arith.constant 0 : index
    %175 = vector.load %arg13[%c0_60, %c0_61] : memref<32x64xf32, #tpu.memory_space<vmem>>, vector<32x64xf32>
    %cst_62 = arith.constant dense<0.000000e+00> : vector<16x64xf32>
    %176 = tpu.matmul %174, %175, %cst_62 {dimension_numbers = #tpu.dot_dimension_numbers<[1], [0], [0], [1], [0, 0, 1, 1], [], []>} : vector<16x32xf32>, vector<32x64xf32>, vector<16x64xf32> -> vector<16x64xf32>
    %c0_63 = arith.constant 0 : index
    %c0_64 = arith.constant 0 : index
    %177 = vector.load %arg14[%c0_63, %c0_64] : memref<1x64xf32, #tpu.memory_space<vmem>>, vector<1x64xf32>
    %178 = vector.broadcast %177 : vector<1x64xf32> to vector<16x64xf32>
    %179 = arith.addf %176, %178 : vector<16x64xf32>
    %cst_65 = arith.constant 0.000000e+00 : f32
    %180 = vector.broadcast %cst_65 : f32 to vector<16x64xf32>
    %181 = arith.maximumf %179, %180 : vector<16x64xf32>
    %c0_66 = arith.constant 0 : index
    %c0_67 = arith.constant 0 : index
    %182 = vector.load %arg15[%c0_66, %c0_67] : memref<64x32xf32, #tpu.memory_space<vmem>>, vector<64x32xf32>
    %cst_68 = arith.constant dense<0.000000e+00> : vector<16x32xf32>
    %183 = tpu.matmul %181, %182, %cst_68 {dimension_numbers = #tpu.dot_dimension_numbers<[1], [0], [0], [1], [0, 0, 1, 1], [], []>} : vector<16x64xf32>, vector<64x32xf32>, vector<16x32xf32> -> vector<16x32xf32>
    %c0_69 = arith.constant 0 : index
    %c0_70 = arith.constant 0 : index
    %184 = vector.load %arg16[%c0_69, %c0_70] : memref<1x32xf32, #tpu.memory_space<vmem>>, vector<1x32xf32>
    %185 = vector.broadcast %184 : vector<1x32xf32> to vector<16x32xf32>
    %186 = arith.addf %183, %185 : vector<16x32xf32>
    %187 = arith.addf %150, %186 : vector<16x32xf32>
    %c0_71 = arith.constant 0 : index
    %c0_72 = arith.constant 0 : index
    %188 = vector.load %arg21[%c0_71, %c0_72] : memref<16x32xf32, #tpu.memory_space<vmem>>, vector<16x32xf32>
    tpu.vector_store %arg21[%c0_71, %c0_72], %187 {strides = array<i32>} : memref<16x32xf32, #tpu.memory_space<vmem>>, vector<16x32xf32>,
    return
  }
  func.func @transform_0(%arg0: i32) -> (i32, i32) {
    %c0_i32 = arith.constant 0 : i32
    %c0_i32_0 = arith.constant 0 : i32
    %c0_i32_1 = arith.constant 0 : i32
    return %c0_i32, %c0_i32_0 : i32, i32
  }
  func.func @transform_1(%arg0: i32) -> (i32, i32) {
    %c0_i32 = arith.constant 0 : i32
    %c0_i32_0 = arith.constant 0 : i32
    %c0_i32_1 = arith.constant 0 : i32
    return %c0_i32, %c0_i32_0 : i32, i32
  }
  func.func @transform_2(%arg0: i32) -> (i32, i32) {
    %c0_i32 = arith.constant 0 : i32
    %c0_i32_0 = arith.constant 0 : i32
    %c0_i32_1 = arith.constant 0 : i32
    return %c0_i32, %c0_i32_0 : i32, i32
  }
  func.func @transform_3(%arg0: i32) -> (i32, i32) {
    %c0_i32 = arith.constant 0 : i32
    %c0_i32_0 = arith.constant 0 : i32
    %c0_i32_1 = arith.constant 0 : i32
    return %c0_i32, %c0_i32_0 : i32, i32
  }
  func.func @transform_4(%arg0: i32) -> (i32, i32) {
    %c0_i32 = arith.constant 0 : i32
    %c0_i32_0 = arith.constant 0 : i32
    %c0_i32_1 = arith.constant 0 : i32
    return %c0_i32, %c0_i32_0 : i32, i32
  }
  func.func @transform_5(%arg0: i32) -> (i32, i32) {
    %c0_i32 = arith.constant 0 : i32
    %c0_i32_0 = arith.constant 0 : i32
    %c0_i32_1 = arith.constant 0 : i32
    return %c0_i32, %c0_i32_0 : i32, i32
  }
  func.func @transform_6(%arg0: i32) -> (i32, i32) {
    %c0_i32 = arith.constant 0 : i32
    %c0_i32_0 = arith.constant 0 : i32
    %c0_i32_1 = arith.constant 0 : i32
    return %c0_i32, %c0_i32_0 : i32, i32
  }
  func.func @transform_7(%arg0: i32) -> (i32, i32) {
    %c0_i32 = arith.constant 0 : i32
    %c0_i32_0 = arith.constant 0 : i32
    %c0_i32_1 = arith.constant 0 : i32
    return %c0_i32, %c0_i32_0 : i32, i32
  }
  func.func @transform_8(%arg0: i32) -> (i32, i32) {
    %c0_i32 = arith.constant 0 : i32
    %c0_i32_0 = arith.constant 0 : i32
    %c0_i32_1 = arith.constant 0 : i32
    return %c0_i32, %c0_i32_0 : i32, i32
  }
  func.func @transform_9(%arg0: i32) -> (i32, i32) {
    %c0_i32 = arith.constant 0 : i32
    %c0_i32_0 = arith.constant 0 : i32
    %c0_i32_1 = arith.constant 0 : i32
    return %c0_i32, %c0_i32_0 : i32, i32
  }
  func.func @transform_10(%arg0: i32) -> (i32, i32) {
    %c0_i32 = arith.constant 0 : i32
    %c0_i32_0 = arith.constant 0 : i32
    %c0_i32_1 = arith.constant 0 : i32
    return %c0_i32, %c0_i32_0 : i32, i32
  }
  func.func @transform_11(%arg0: i32) -> (i32, i32) {
    %c0_i32 = arith.constant 0 : i32
    %c0_i32_0 = arith.constant 0 : i32
    %c0_i32_1 = arith.constant 0 : i32
    return %c0_i32, %c0_i32_0 : i32, i32
  }
  func.func @transform_12(%arg0: i32) -> (i32, i32) {
    %c0_i32 = arith.constant 0 : i32
    %c0_i32_0 = arith.constant 0 : i32
    %c0_i32_1 = arith.constant 0 : i32
    return %c0_i32, %c0_i32_0 : i32, i32
  }
  func.func @transform_13(%arg0: i32) -> (i32, i32) {
    %c0_i32 = arith.constant 0 : i32
    %c0_i32_0 = arith.constant 0 : i32
    %c0_i32_1 = arith.constant 0 : i32
    return %c0_i32, %c0_i32_0 : i32, i32
  }
  func.func @transform_14(%arg0: i32) -> (i32, i32) {
    %c0_i32 = arith.constant 0 : i32
    %c0_i32_0 = arith.constant 0 : i32
    %c0_i32_1 = arith.constant 0 : i32
    return %c0_i32, %c0_i32_0 : i32, i32
  }
  func.func @transform_15(%arg0: i32) -> (i32, i32) {
    %c0_i32 = arith.constant 0 : i32
    %c0_i32_0 = arith.constant 0 : i32
    %c0_i32_1 = arith.constant 0 : i32
    return %c0_i32, %c0_i32_0 : i32, i32
  }
  func.func @transform_16(%arg0: i32) -> (i32, i32) {
    %c0_i32 = arith.constant 0 : i32
    %c0_i32_0 = arith.constant 0 : i32
    %c0_i32_1 = arith.constant 0 : i32
    return %c0_i32, %c0_i32_0 : i32, i32
  }
  func.func @transform_17(%arg0: i32) -> (i32, i32) {
    %c0_i32 = arith.constant 0 : i32
    %c0_i32_0 = arith.constant 0 : i32
    %c0_i32_1 = arith.constant 0 : i32
    return %c0_i32, %c0_i32_0 : i32, i32
  }
  func.func @transform_18(%arg0: i32) -> (i32, i32) {
    %c0_i32 = arith.constant 0 : i32
    %c0_i32_0 = arith.constant 0 : i32
    %c0_i32_1 = arith.constant 0 : i32
    return %c0_i32, %c0_i32_0 : i32, i32
  }
  func.func @transform_19(%arg0: i32) -> (i32, i32) {
    %c0_i32 = arith.constant 0 : i32
    %c0_i32_0 = arith.constant 0 : i32
    %c0_i32_1 = arith.constant 0 : i32
    return %c0_i32, %c0_i32_0 : i32, i32
  }
  func.func @transform_20(%arg0: i32) -> (i32, i32) {
    %c0_i32 = arith.constant 0 : i32
    %c0_i32_0 = arith.constant 0 : i32
    %c0_i32_1 = arith.constant 0 : i32
    return %c0_i32, %c0_i32_0 : i32, i32
  }
}

</mosaic_0001>

<llo_original>
// kernel: tpu_custom_call.1
$region0: #{tpu_custom_call.1}
  #allocation0 [shape = 'u32[]', space=smem, size = 0x4, offset = 0x4, fixed_abs, tag = 'smem constant byte address 0x4 - core index']
  #allocation1 [shape = 'u32[144,128]{1,0:T(1,128)}', space=vmem, size = 0x12000, scoped, tag = 'internal scratch']
  %s0 = inlined_call_operand.hbm [shape: f32[16,32], index: 0, kind: input, shape index: {}]
  %s1 = inlined_call_operand.hbm [shape: f32[32,32], index: 1, kind: input, shape index: {}]
  %s2 = inlined_call_operand.hbm [shape: f32[32,96], index: 2, kind: input, shape index: {}]
  %s3 = inlined_call_operand.vmem [shape: f32[1,96], index: 3, kind: input, shape index: {}]
  %s4 = inlined_call_operand.hbm [shape: f32[32,32], index: 4, kind: input, shape index: {}]
  %s5 = inlined_call_operand.hbm [shape: f32[1,32], index: 5, kind: input, shape index: {}]
  %s6 = inlined_call_operand.hbm [shape: f32[32,32], index: 6, kind: input, shape index: {}]
  %s7 = inlined_call_operand.hbm [shape: f32[1,32], index: 7, kind: input, shape index: {}]
  %s8 = inlined_call_operand.hbm [shape: f32[32,64], index: 8, kind: input, shape index: {}]
  %s9 = inlined_call_operand.hbm [shape: f32[1,64], index: 9, kind: input, shape index: {}]
  %s10 = inlined_call_operand.hbm [shape: f32[32,32], index: 10, kind: input, shape index: {}]
  %s11 = inlined_call_operand.hbm [shape: f32[1,32], index: 11, kind: input, shape index: {}]
  %s12 = inlined_call_operand.hbm [shape: f32[32,64], index: 12, kind: input, shape index: {}]
  %s13 = inlined_call_operand.vmem [shape: f32[1,64], index: 13, kind: input, shape index: {}]
  %s14 = inlined_call_operand.vmem [shape: f32[64,32], index: 14, kind: input, shape index: {}]
  %s15 = inlined_call_operand.vmem [shape: f32[1,32], index: 15, kind: input, shape index: {}]
  %s16 = inlined_call_operand.vmem [shape: f32[3,32], index: 16, kind: input, shape index: {}]
  %s17 = inlined_call_operand.vmem [shape: f32[3,32], index: 17, kind: input, shape index: {}]
  %s18 = inlined_call_operand.vmem [shape: f32[64,64], index: 18, kind: input, shape index: {}]
  %s19 = inlined_call_operand.vmem [shape: f32[64,128], index: 19, kind: input, shape index: {}]
  %s20 = inlined_call_operand.hbm [shape: f32[16,32], index: 20, kind: output, shape index: {}]
  %s21 = sld [smem:[#allocation0]]
  $region138: #{tpu_custom_call.1} parent=0
    _
  %s23 = ssub.s32 1, %s21
  %s24 = scalar_select 0, %s23, %s21
  $region1: #{tpu_custom_call.1} parent=0
    #allocation2 [shape = 'u8[8192]{0}', space=vmem, size = 0x2000, scoped, tag = 'input window, operand 0, single buffered']
    #allocation3 [shape = 's32[1]{0}', space=sflag, size = 0x4, scoped, tag = 'scoped memory for tpu_custom_call.1']
    #allocation4 [shape = 's32[1]{0}', space=sflag, size = 0x4, scoped, tag = 'scoped memory for tpu_custom_call.1']
    #allocation5 [shape = 'u8[16384]{0}', space=vmem, size = 0x4000, scoped, tag = 'input window, operand 1, single buffered']
    #allocation6 [shape = 's32[1]{0}', space=sflag, size = 0x4, scoped, tag = 'scoped memory for tpu_custom_call.1']
    #allocation7 [shape = 'u8[16384]{0}', space=vmem, size = 0x4000, scoped, tag = 'input window, operand 2, single buffered']
    #allocation8 [shape = 'u8[16384]{0}', space=vmem, size = 0x4000, scoped, tag = 'input window, operand 4, single buffered']
    #allocation9 [shape = 's32[1]{0}', space=sflag, size = 0x4, scoped, tag = 'scoped memory for tpu_custom_call.1']
    #allocation10 [shape = 'u8[512]{0}', space=vmem, size = 0x400, scoped, tag = 'input window, operand 5, single buffered']
    #allocation11 [shape = 'u8[16384]{0}', space=vmem, size = 0x4000, scoped, tag = 'input window, operand 6, single buffered']
    #allocation12 [shape = 's32[1]{0}', space=sflag, size = 0x4, scoped, tag = 'scoped memory for tpu_custom_call.1']
    #allocation13 [shape = 'u8[512]{0}', space=vmem, size = 0x400, scoped, tag = 'input window, operand 7, single buffered']
    #allocation14 [shape = 'u8[16384]{0}', space=vmem, size = 0x4000, scoped, tag = 'input window, operand 8, single buffered']
    #allocation15 [shape = 's32[1]{0}', space=sflag, size = 0x4, scoped, tag = 'scoped memory for tpu_custom_call.1']
    #allocation16 [shape = 'u8[512]{0}', space=vmem, size = 0x400, scoped, tag = 'input window, operand 9, single buffered']
    #allocation17 [shape = 'u8[16384]{0}', space=vmem, size = 0x4000, scoped, tag = 'input window, operand 10, single buffered']
    #allocation18 [shape = 's32[1]{0}', space=sflag, size = 0x4, scoped, tag = 'scoped memory for tpu_custom_call.1']
    #allocation19 [shape = 'u8[512]{0}', space=vmem, size = 0x400, scoped, tag = 'input window, operand 11, single buffered']
    #allocation20 [shape = 'u8[16384]{0}', space=vmem, size = 0x4000, scoped, tag = 'input window, operand 12, single buffered']
    #allocation21 [shape = 's32[1]{0}', space=sflag, size = 0x4, scoped, tag = 'scoped memory for tpu_custom_call.1']
    #allocation22 [shape = 'u8[8192]{0}', space=vmem, size = 0x2000, scoped, tag = 'output window, operand 0, single buffered']
    %25 = vsyncpa [#allocation3], 0
    %26 = vsyncpa [#allocation6], 0
    %27 = vsyncpa [#allocation9], 0
    %28 = vsyncpa [#allocation12], 0
    %29 = vsyncpa [#allocation15], 0
    %30 = vsyncpa [#allocation18], 0
    %31 = vsyncpa [#allocation21], 0
    %32 = vsyncpa [#allocation4], 0
    // Predicated region
    $region2: #{tpu_custom_call.1} parent=1 // pred_check
      _
    $region3: #{tpu_custom_call.1} parent=1 // pred_check_branch
      %34 = sbr.rel (0) target = $region5
    $region4: #{tpu_custom_call.1} parent=1 // pred_region
      %s36 = ssub.s32 256, 256
      %37 = vsyncadd [#allocation3], %s36
      %s38 = sshll.u32 [#allocation2], 4
      %s39 = int_to_ptr.vmem [resolvable:$true] %s38
      %44 = dma.hbm_to_vmem [thread:$0]  %s0, 256, %s39, [#allocation3], 128, 128, 8
    $region5: #{tpu_custom_call.1} parent=1 // pred_fallthru
      _
    // Predicated region
    $region6: #{tpu_custom_call.1} parent=1 // pred_check
      _
    $region7: #{tpu_custom_call.1} parent=1 // pred_check_branch
      %46 = sbr.rel (0) target = $region9
    $region8: #{tpu_custom_call.1} parent=1 // pred_region
      %s48 = ssub.s32 512, 512
      %49 = vsyncadd [#allocation6], %s48
      %s50 = sshll.u32 [#allocation5], 4
      %s51 = int_to_ptr.vmem [resolvable:$true] %s50
      %56 = dma.hbm_to_vmem [thread:$0]  %s1, 512, %s51, [#allocation6], 128, 128, 8
    $region9: #{tpu_custom_call.1} parent=1 // pred_fallthru
      _
    // Predicated region
    $region10: #{tpu_custom_call.1} parent=1 // pred_check
      _
    $region11: #{tpu_custom_call.1} parent=1 // pred_check_branch
      %58 = sbr.rel (0) target = $region13
    $region12: #{tpu_custom_call.1} parent=1 // pred_region
      %s60 = ssub.s32 512, 512
      %61 = vsyncadd [#allocation6], %s60
      %s62 = sshll.u32 [#allocation7], 4
      %s63 = int_to_ptr.vmem [resolvable:$true] %s62
      %68 = dma.hbm_to_vmem [thread:$0]  %s2, 512, %s63, [#allocation6], 128, 128, 8
    $region13: #{tpu_custom_call.1} parent=1 // pred_fallthru
      _
    // Predicated region
    $region14: #{tpu_custom_call.1} parent=1 // pred_check
      _
    $region15: #{tpu_custom_call.1} parent=1 // pred_check_branch
      %70 = sbr.rel (0) target = $region17
    $region16: #{tpu_custom_call.1} parent=1 // pred_region
      _
    $region17: #{tpu_custom_call.1} parent=1 // pred_fallthru
      _
    // Predicated region
    $region18: #{tpu_custom_call.1} parent=1 // pred_check
      _
    $region19: #{tpu_custom_call.1} parent=1 // pred_check_branch
      %72 = sbr.rel (0) target = $region21
    $region20: #{tpu_custom_call.1} parent=1 // pred_region
      %s74 = ssub.s32 512, 512
      %75 = vsyncadd [#allocation9], %s74
      %s76 = sshll.u32 [#allocation8], 4
      %s77 = int_to_ptr.vmem [resolvable:$true] %s76
      %82 = dma.hbm_to_vmem [thread:$0]  %s4, 512, %s77, [#allocation9], 128, 128, 8
    $region21: #{tpu_custom_call.1} parent=1 // pred_fallthru
      _
    // Predicated region
    $region22: #{tpu_custom_call.1} parent=1 // pred_check
      _
    $region23: #{tpu_custom_call.1} parent=1 // pred_check_branch
      %84 = sbr.rel (0) target = $region25
    $region24: #{tpu_custom_call.1} parent=1 // pred_region
      %s86 = ssub.s32 16, 16
      %87 = vsyncadd [#allocation9], %s86
      %s89 = sshll.u32 [#allocation10], 4
      %s90 = int_to_ptr.vmem [resolvable:$true] %s89
      %92 = dma.hbm_to_vmem [thread:$0]  %s5, 16, %s90, [#allocation9]
    $region25: #{tpu_custom_call.1} parent=1 // pred_fallthru
      _
    // Predicated region
    $region26: #{tpu_custom_call.1} parent=1 // pred_check
      _
    $region27: #{tpu_custom_call.1} parent=1 // pred_check_branch
      %94 = sbr.rel (0) target = $region29
    $region28: #{tpu_custom_call.1} parent=1 // pred_region
      %s96 = ssub.s32 512, 512
      %97 = vsyncadd [#allocation12], %s96
      %s98 = sshll.u32 [#allocation11], 4
      %s99 = int_to_ptr.vmem [resolvable:$true] %s98
      %104 = dma.hbm_to_vmem [thread:$0]  %s6, 512, %s99, [#allocation12], 128, 128, 8
    $region29: #{tpu_custom_call.1} parent=1 // pred_fallthru
      _
    // Predicated region
    $region30: #{tpu_custom_call.1} parent=1 // pred_check
      _
    $region31: #{tpu_custom_call.1} parent=1 // pred_check_branch
      %106 = sbr.rel (0) target = $region33
    $region32: #{tpu_custom_call.1} parent=1 // pred_region
      %s108 = ssub.s32 16, 16
      %109 = vsyncadd [#allocation12], %s108
      %s111 = sshll.u32 [#allocation13], 4
      %s112 = int_to_ptr.vmem [resolvable:$true] %s111
      %114 = dma.hbm_to_vmem [thread:$0]  %s7, 16, %s112, [#allocation12]
    $region33: #{tpu_custom_call.1} parent=1 // pred_fallthru
      _
    // Predicated region
    $region34: #{tpu_custom_call.1} parent=1 // pred_check
      _
    $region35: #{tpu_custom_call.1} parent=1 // pred_check_branch
      %116 = sbr.rel (0) target = $region37
    $region36: #{tpu_custom_call.1} parent=1 // pred_region
      %s118 = ssub.s32 512, 512
      %119 = vsyncadd [#allocation15], %s118
      %s120 = sshll.u32 [#allocation14], 4
      %s121 = int_to_ptr.vmem [resolvable:$true] %s120
      %126 = dma.hbm_to_vmem [thread:$0]  %s8, 512, %s121, [#allocation15], 128, 128, 8
    $region37: #{tpu_custom_call.1} parent=1 // pred_fallthru
      _
    // Predicated region
    $region38: #{tpu_custom_call.1} parent=1 // pred_check
      _
    $region39: #{tpu_custom_call.1} parent=1 // pred_check_branch
      %128 = sbr.rel (0) target = $region41
    $region40: #{tpu_custom_call.1} parent=1 // pred_region
      %s130 = ssub.s32 16, 16
      %131 = vsyncadd [#allocation15], %s130
      %s133 = sshll.u32 [#allocation16], 4
      %s134 = int_to_ptr.vmem [resolvable:$true] %s133
      %136 = dma.hbm_to_vmem [thread:$0]  %s9, 16, %s134, [#allocation15]
    $region41: #{tpu_custom_call.1} parent=1 // pred_fallthru
      _
    // Predicated region
    $region42: #{tpu_custom_call.1} parent=1 // pred_check
      _
    $region43: #{tpu_custom_call.1} parent=1 // pred_check_branch
      %138 = sbr.rel (0) target = $region45
    $region44: #{tpu_custom_call.1} parent=1 // pred_region
      %s140 = ssub.s32 512, 512
      %141 = vsyncadd [#allocation18], %s140
      %s142 = sshll.u32 [#allocation17], 4
      %s143 = int_to_ptr.vmem [resolvable:$true] %s142
      %148 = dma.hbm_to_vmem [thread:$0]  %s10, 512, %s143, [#allocation18], 128, 128, 8
    $region45: #{tpu_custom_call.1} parent=1 // pred_fallthru
      _
    // Predicated region
    $region46: #{tpu_custom_call.1} parent=1 // pred_check
      _
    $region47: #{tpu_custom_call.1} parent=1 // pred_check_branch
      %150 = sbr.rel (0) target = $region49
    $region48: #{tpu_custom_call.1} parent=1 // pred_region
      %s152 = ssub.s32 16, 16
      %153 = vsyncadd [#allocation18], %s152
      %s155 = sshll.u32 [#allocation19], 4
      %s156 = int_to_ptr.vmem [resolvable:$true] %s155
      %158 = dma.hbm_to_vmem [thread:$0]  %s11, 16, %s156, [#allocation18]
    $region49: #{tpu_custom_call.1} parent=1 // pred_fallthru
      _
    // Predicated region
    $region50: #{tpu_custom_call.1} parent=1 // pred_check
      _
    $region51: #{tpu_custom_call.1} parent=1 // pred_check_branch
      %160 = sbr.rel (0) target = $region53
    $region52: #{tpu_custom_call.1} parent=1 // pred_region
      %s162 = ssub.s32 512, 512
      %163 = vsyncadd [#allocation21], %s162
      %s164 = sshll.u32 [#allocation20], 4
      %s165 = int_to_ptr.vmem [resolvable:$true] %s164
      %170 = dma.hbm_to_vmem [thread:$0]  %s12, 512, %s165, [#allocation21], 128, 128, 8
    $region53: #{tpu_custom_call.1} parent=1 // pred_fallthru
      _
    // Predicated region
    $region54: #{tpu_custom_call.1} parent=1 // pred_check
      _
    $region55: #{tpu_custom_call.1} parent=1 // pred_check_branch
      %172 = sbr.rel (0) target = $region57
    $region56: #{tpu_custom_call.1} parent=1 // pred_region
      _
    $region57: #{tpu_custom_call.1} parent=1 // pred_fallthru
      _
    // Predicated region
    $region58: #{tpu_custom_call.1} parent=1 // pred_check
      _
    $region59: #{tpu_custom_call.1} parent=1 // pred_check_branch
      %174 = sbr.rel (0) target = $region61
    $region60: #{tpu_custom_call.1} parent=1 // pred_region
      _
    $region61: #{tpu_custom_call.1} parent=1 // pred_fallthru
      _
    // Predicated region
    $region62: #{tpu_custom_call.1} parent=1 // pred_check
      _
    $region63: #{tpu_custom_call.1} parent=1 // pred_check_branch
      %176 = sbr.rel (0) target = $region65
    $region64: #{tpu_custom_call.1} parent=1 // pred_region
      _
    $region65: #{tpu_custom_call.1} parent=1 // pred_fallthru
      _
    // Predicated region
    $region66: #{tpu_custom_call.1} parent=1 // pred_check
      _
    $region67: #{tpu_custom_call.1} parent=1 // pred_check_branch
      %178 = sbr.rel (0) target = $region69
    $region68: #{tpu_custom_call.1} parent=1 // pred_region
      _
    $region69: #{tpu_custom_call.1} parent=1 // pred_fallthru
      _
    // Predicated region
    $region70: #{tpu_custom_call.1} parent=1 // pred_check
      _
    $region71: #{tpu_custom_call.1} parent=1 // pred_check_branch
      %180 = sbr.rel (0) target = $region73
    $region72: #{tpu_custom_call.1} parent=1 // pred_region
      _
    $region73: #{tpu_custom_call.1} parent=1 // pred_fallthru
      _
    // Predicated region
    $region74: #{tpu_custom_call.1} parent=1 // pred_check
      _
    $region75: #{tpu_custom_call.1} parent=1 // pred_check_branch
      %182 = sbr.rel (0) target = $region77
    $region76: #{tpu_custom_call.1} parent=1 // pred_region
      _
    $region77: #{tpu_custom_call.1} parent=1 // pred_fallthru
      _
    // Predicated region
    $region78: #{tpu_custom_call.1} parent=1 // pred_check
      _
    $region79: #{tpu_custom_call.1} parent=1 // pred_check_branch
      %184 = sbr.rel (0) target = $region81
    $region80: #{tpu_custom_call.1} parent=1 // pred_region
      _
    $region81: #{tpu_custom_call.1} parent=1 // pred_fallthru
      _
    // Predicated region
    $region82: #{tpu_custom_call.1} parent=1 // pred_check
      _
    $region83: #{tpu_custom_call.1} parent=1 // pred_check_branch
      %186 = sbr.rel (0) target = $region85
    $region84: #{tpu_custom_call.1} parent=1 // pred_region
      %187 = dma.done [#allocation3], 256
    $region85: #{tpu_custom_call.1} parent=1 // pred_fallthru
      _
    // Predicated region
    $region86: #{tpu_custom_call.1} parent=1 // pred_check
      _
    $region87: #{tpu_custom_call.1} parent=1 // pred_check_branch
      %189 = sbr.rel (0) target = $region89
    $region88: #{tpu_custom_call.1} parent=1 // pred_region
      %190 = dma.done [#allocation6], 512
    $region89: #{tpu_custom_call.1} parent=1 // pred_fallthru
      _
    // Predicated region
    $region90: #{tpu_custom_call.1} parent=1 // pred_check
      _
    $region91: #{tpu_custom_call.1} parent=1 // pred_check_branch
      %192 = sbr.rel (0) target = $region93
    $region92: #{tpu_custom_call.1} parent=1 // pred_region
      %193 = dma.done [#allocation6], 512
    $region93: #{tpu_custom_call.1} parent=1 // pred_fallthru
      _
    // Predicated region
    $region94: #{tpu_custom_call.1} parent=1 // pred_check
      _
    $region95: #{tpu_custom_call.1} parent=1 // pred_check_branch
      %195 = sbr.rel (0) target = $region97
    $region96: #{tpu_custom_call.1} parent=1 // pred_region
      %196 = dma.done [#allocation9], 512
    $region97: #{tpu_custom_call.1} parent=1 // pred_fallthru
      _
    // Predicated region
    $region98: #{tpu_custom_call.1} parent=1 // pred_check
      _
    $region99: #{tpu_custom_call.1} parent=1 // pred_check_branch
      %198 = sbr.rel (0) target = $region101
    $region100: #{tpu_custom_call.1} parent=1 // pred_region
      %199 = dma.done [#allocation9], 16
    $region101: #{tpu_custom_call.1} parent=1 // pred_fallthru
      _
    // Predicated region
    $region102: #{tpu_custom_call.1} parent=1 // pred_check
      _
    $region103: #{tpu_custom_call.1} parent=1 // pred_check_branch
      %201 = sbr.rel (0) target = $region105
    $region104: #{tpu_custom_call.1} parent=1 // pred_region
      %202 = dma.done [#allocation12], 512
    $region105: #{tpu_custom_call.1} parent=1 // pred_fallthru
      _
    // Predicated region
    $region106: #{tpu_custom_call.1} parent=1 // pred_check
      _
    $region107: #{tpu_custom_call.1} parent=1 // pred_check_branch
      %204 = sbr.rel (0) target = $region109
    $region108: #{tpu_custom_call.1} parent=1 // pred_region
      %205 = dma.done [#allocation12], 16
    $region109: #{tpu_custom_call.1} parent=1 // pred_fallthru
      _
    // Predicated region
    $region110: #{tpu_custom_call.1} parent=1 // pred_check
      _
    $region111: #{tpu_custom_call.1} parent=1 // pred_check_branch
      %207 = sbr.rel (0) target = $region113
    $region112: #{tpu_custom_call.1} parent=1 // pred_region
      %208 = dma.done [#allocation15], 512
    $region113: #{tpu_custom_call.1} parent=1 // pred_fallthru
      _
    // Predicated region
    $region114: #{tpu_custom_call.1} parent=1 // pred_check
      _
    $region115: #{tpu_custom_call.1} parent=1 // pred_check_branch
      %210 = sbr.rel (0) target = $region117
    $region116: #{tpu_custom_call.1} parent=1 // pred_region
      %211 = dma.done [#allocation15], 16
    $region117: #{tpu_custom_call.1} parent=1 // pred_fallthru
      _
    // Predicated region
    $region118: #{tpu_custom_call.1} parent=1 // pred_check
      _
    $region119: #{tpu_custom_call.1} parent=1 // pred_check_branch
      %213 = sbr.rel (0) target = $region121
    $region120: #{tpu_custom_call.1} parent=1 // pred_region
      %214 = dma.done [#allocation18], 512
    $region121: #{tpu_custom_call.1} parent=1 // pred_fallthru
      _
    // Predicated region
    $region122: #{tpu_custom_call.1} parent=1 // pred_check
      _
    $region123: #{tpu_custom_call.1} parent=1 // pred_check_branch
      %216 = sbr.rel (0) target = $region125
    $region124: #{tpu_custom_call.1} parent=1 // pred_region
      %217 = dma.done [#allocation18], 16
    $region125: #{tpu_custom_call.1} parent=1 // pred_fallthru
      _
    // Predicated region
    $region126: #{tpu_custom_call.1} parent=1 // pred_check
      _
    $region127: #{tpu_custom_call.1} parent=1 // pred_check_branch
      %219 = sbr.rel (0) target = $region129
    $region128: #{tpu_custom_call.1} parent=1 // pred_region
      %220 = dma.done [#allocation21], 512
    $region129: #{tpu_custom_call.1} parent=1 // pred_fallthru
      _
    %v221 = vld [vmem:[#allocation2] sm:$0xff]
    %v222 = vld [vmem:[#allocation2 + $0x8] sm:$0xff]
    %v223 = vld [vmem:[#allocation5] sm:$0xff]
    %v224 = vld [vmem:[#allocation5 + $0x8] sm:$0xff]
    %v225 = vld [vmem:[#allocation5 + $0x10] sm:$0xff]
    %v226 = vld [vmem:[#allocation5 + $0x18] sm:$0xff]
    %v227 = vld [vmem:[%s16] sm:$0x7]
    %v228 = vld [vmem:[%s17] sm:$0x7]
    %vm229 = vcmask 261120
    %v230 = vsel %vm229, %v221, 0.0
    %231 = vadd.xlane.f32.xlu0 %v230
    %v232 = vpop.xlane.xlu0 %231
    %v233 = vsel %vm229, %v222, 0.0
    %234 = vadd.xlane.f32.xlu0 %v233
    %v235 = vpop.xlane.xlu0 %234
    %v236 = vrcp.pop 32.0
    %v237 = vmul.f32 %v232, %v236
    %v238 = vmul.f32 %v235, %v236
    %v239 = vsub.f32 %v221, %v237
    %v240 = vsub.f32 %v222, %v238
    %v241 = vmul.f32 %v239, %v239
    %v242 = vmul.f32 %v240, %v240
    %v243 = vsel %vm229, %v241, 0.0
    %244 = vadd.xlane.f32.xlu0 %v243
    %v245 = vpop.xlane.xlu0 %244
    %v246 = vsel %vm229, %v242, 0.0
    %247 = vadd.xlane.f32.xlu0 %v246
    %v248 = vpop.xlane.xlu0 %247
    %v249 = vmul.f32 %v245, %v236
    %v250 = vmul.f32 %v248, %v236
    %v251 = vlaneseq
    %v252 = vshrl.u32 %v251, 7
    %v253 = vsub.s32 0, %v252
    %v254 = vrot.slane %v227, %v253
    %v255 = vmul.f32 %v254, %v239
    %v256 = vmul.f32 %v254, %v240
    %v257 = vadd.f32 %v249, 1e-06
    %v258 = vadd.f32 %v250, 1e-06
    %v259 = vrsqrt.pop %v257
    %v260 = vrsqrt.pop %v258
    %v261 = vmul.f32 %v255, %v259
    %v262 = vmul.f32 %v256, %v260
    %v263 = vlaneseq
    %v264 = vshrl.u32 %v263, 7
    %v265 = vsub.s32 0, %v264
    %v266 = vrot.slane %v228, %v265
    %v267 = vadd.f32 %v261, %v266
    %v268 = vadd.f32 %v262, %v266
    %v269 = vld [vmem:[#allocation7] sm:$0xff]
    %v270 = vld [vmem:[#allocation7 + $0x8] sm:$0xff]
    %v271 = vld [vmem:[#allocation7 + $0x10] sm:$0xff]
    %v272 = vld [vmem:[#allocation7 + $0x18] sm:$0xff]
    %v273 = vld [vmem:[%s3] sm:$0x1]
    %v275 = vlaneseq
    %v276 = vshrl.u32 %v275, 7
    %v277 = vsub.s32 0, %v276
    %v278 = vrot.slane %v273, %v277
    %v281 = vsel %vm229, %v267, 0
    %v284 = vsel %vm229, %v268, 0
    %286 = vmatprep.subr.mxu0 0.0
    %287 = vmatpush1.msra.mxu0 %v269
    %288 = vmatprep.subr.mxu0 0.0
    %289 = vmatpush1.msra.mxu0 %v270
    %290 = vmatprep.subr.mxu0 0.0
    %291 = vmatpush1.msra.mxu0 %v271
    %292 = vmatprep.subr.mxu0 0.0
    %293 = vmatpush1.msra.mxu0 %v272
    %294 = vmatprep.subr.mxu0 0.0
    %295 = vmatpush1.msra.mxu0 0.0
    %296 = vmatprep.subr.mxu0 0.0
    %297 = vmatpush1.msra.mxu0 0.0
    %298 = vmatprep.subr.mxu0 0.0
    %299 = vmatpush1.msra.mxu0 0.0
    %300 = vmatprep.subr.mxu0 0.0
    %301 = vmatpush1.msra.mxu0 0.0
    %302 = vmatprep.subr.mxu0 0.0
    %303 = vmatpush1.msra.mxu0 0.0
    %304 = vmatprep.subr.mxu0 0.0
    %305 = vmatpush1.msra.mxu0 0.0
    %306 = vmatprep.subr.mxu0 0.0
    %307 = vmatpush1.msra.mxu0 0.0
    %308 = vmatprep.subr.mxu0 0.0
    %309 = vmatpush1.msra.mxu0 0.0
    %310 = vmatprep.subr.mxu0 0.0
    %311 = vmatpush1.msra.mxu0 0.0
    %312 = vmatprep.subr.mxu0 0.0
    %313 = vmatpush1.msra.mxu0 0.0
    %314 = vmatprep.subr.mxu0 0.0
    %315 = vmatpush1.msra.mxu0 0.0
    %316 = vmatprep.subr.mxu0 0.0
    %317 = vmatpush1.msra.mxu0 0.0
    %318 = vmatprep.subr.mxu0 0.0
    %319 = vmatpush1.msra.mxu0 0.0
    %320 = vmatprep.subr.mxu0 0.0
    %321 = vmatpush1.msra.mxu0 0.0
    %322 = vmatprep.subr.mxu0 0.0
    %323 = vmatpush1.msra.mxu0 0.0
    %324 = vmatprep.subr.mxu0 0.0
    %325 = vmatpush1.msra.mxu0 0.0
    %326 = vmatprep.subr.mxu0 0.0
    %327 = vmatpush1.msra.mxu0 0.0
    %328 = vmatprep.subr.mxu0 0.0
    %329 = vmatpush1.msra.mxu0 0.0
    %330 = vmatprep.subr.mxu0 0.0
    %331 = vmatpush1.msra.mxu0 0.0
    %332 = vmatprep.subr.mxu0 0.0
    %333 = vmatpush1.msra.mxu0 0.0
    %334 = vmatprep.subr.mxu0 0.0
    %335 = vmatpush1.msra.mxu0 0.0
    %336 = vmatprep.subr.mxu0 0.0
    %337 = vmatpush1.msra.mxu0 0.0
    %338 = vmatprep.subr.mxu0 0.0
    %339 = vmatpush1.msra.mxu0 0.0
    %340 = vmatprep.subr.mxu0 0.0
    %341 = vmatpush1.msra.mxu0 0.0
    %342 = vmatprep.subr.mxu0 0.0
    %343 = vmatpush1.msra.mxu0 0.0
    %344 = vmatprep.subr.mxu0 0.0
    %345 = vmatpush1.msra.mxu0 0.0
    %346 = vmatprep.subr.mxu0 0.0
    %347 = vmatpush1.msra.mxu0 0.0
    %348 = vmatprep.subr.mxu0 0.0
    %349 = vmatpush1.msra.mxu0 0.0
    %350 = vmatprep.mubr.f32.mxu0 0.0
    %351 = vmatmul.mubr.f32.gmra.mrb[0].mxu0 %v281
    %v352 = vpop.f32.mrb[0].mxu0
    %v353 = vadd.f32 %v278, %v352
    %v354 = vpop.f32.mrb[0].mxu0
    %355 = vmatprep.mubr.f32.mxu0 0.0
    %356 = vmatmul.mubr.f32.gmra.mrb[0].mxu0 %v284
    %v357 = vpop.f32.mrb[0].mxu0
    %v358 = vadd.f32 %v278, %v357
    %v359 = vpop.f32.mrb[0].mxu0
    %360 = vdwg.mxu0
    %363 = vrot.lane.b32.xlu0 %v353, 120
    %v364 = vpop.permute.xlu0 %363
    %365 = vrot.lane.b32.xlu0 %v358, 120
    %v366 = vpop.permute.xlu0 %365
    %369 = vrot.lane.b32.xlu0 %v353, 112
    %v370 = vpop.permute.xlu0 %369
    %371 = vrot.lane.b32.xlu0 %v358, 112
    %v372 = vpop.permute.xlu0 %371
    %375 = vrot.lane.b32.xlu0 %v353, 104
    %v376 = vpop.permute.xlu0 %375
    %377 = vrot.lane.b32.xlu0 %v358, 104
    %v378 = vpop.permute.xlu0 %377
    %v381 = vmul.f32 %v353, 0.35355338
    %v382 = vmul.f32 %v358, 0.35355338
    %v383 = vmul.f32 %v364, 0.35355338
    %v384 = vmul.f32 %v366, 0.35355338
    %v385 = vmul.f32 %v370, 0.35355338
    %v386 = vmul.f32 %v372, 0.35355338
    %v387 = vmul.f32 %v376, 0.35355338
    %v388 = vmul.f32 %v378, 0.35355338
    %v389 = vld [vmem:[%s18] sm:$0xff]
    %v390 = vld [vmem:[%s18 + $0x8] sm:$0xff]
    %v391 = vld [vmem:[%s18 + $0x10] sm:$0xff]
    %v392 = vld [vmem:[%s18 + $0x18] sm:$0xff]
    %v393 = vld [vmem:[%s18 + $0x20] sm:$0xff]
    %v394 = vld [vmem:[%s18 + $0x28] sm:$0xff]
    %v395 = vld [vmem:[%s18 + $0x30] sm:$0xff]
    %v396 = vld [vmem:[%s18 + $0x38] sm:$0xff]
    %397 = vrot.lane.b32.xlu0 %v353, 96
    %v398 = vpop.permute.xlu0 %397
    %399 = vrot.lane.b32.xlu0 %v358, 96
    %v400 = vpop.permute.xlu0 %399
    %401 = vrot.lane.b32.xlu0 %v364, 96
    %v402 = vpop.permute.xlu0 %401
    %403 = vrot.lane.b32.xlu0 %v366, 96
    %v404 = vpop.permute.xlu0 %403
    %405 = vrot.lane.b32.xlu0 %v370, 96
    %v406 = vpop.permute.xlu0 %405
    %407 = vrot.lane.b32.xlu0 %v372, 96
    %v408 = vpop.permute.xlu0 %407
    %409 = vrot.lane.b32.xlu0 %v376, 96
    %v410 = vpop.permute.xlu0 %409
    %411 = vrot.lane.b32.xlu0 %v378, 96
    %v412 = vpop.permute.xlu0 %411
    %vm413 = vcmask 64512
    %v415 = vsel %vm413, %v381, 0
    %v418 = vsel %vm413, %v382, 0
    %v421 = vsel %vm413, %v383, 0
    %v424 = vsel %vm413, %v384, 0
    %v427 = vsel %vm413, %v385, 0
    %v430 = vsel %vm413, %v386, 0
    %v433 = vsel %vm413, %v387, 0
    %v436 = vsel %vm413, %v388, 0
    %v438 = vsel %vm413, %v398, 0
    %v440 = vsel %vm413, %v400, 0
    %v442 = vsel %vm413, %v402, 0
    %v444 = vsel %vm413, %v404, 0
    %v446 = vsel %vm413, %v406, 0
    %v448 = vsel %vm413, %v408, 0
    %v450 = vsel %vm413, %v410, 0
    %v452 = vsel %vm413, %v412, 0
    %454 = vmatprep.subr.mxu0 0.0
    %455 = vmatpush1.xpose.msra.mxu0 %v438
    %456 = vmatprep.subr.mxu0 0.0
    %457 = vmatpush1.xpose.msra.mxu0 %v440
    %458 = vmatprep.subr.mxu0 0.0
    %459 = vmatpush1.xpose.msra.mxu0 %v442
    %460 = vmatprep.subr.mxu0 0.0
    %461 = vmatpush1.xpose.msra.mxu0 %v444
    %462 = vmatprep.subr.mxu0 0.0
    %463 = vmatpush1.xpose.msra.mxu0 %v446
    %464 = vmatprep.subr.mxu0 0.0
    %465 = vmatpush1.xpose.msra.mxu0 %v448
    %466 = vmatprep.subr.mxu0 0.0
    %467 = vmatpush1.xpose.msra.mxu0 %v450
    %468 = vmatprep.subr.mxu0 0.0
    %469 = vmatpush1.xpose.msra.mxu0 %v452
    %470 = vmatprep.subr.mxu0 0.0
    %471 = vmatpush1.xpose.msra.mxu0 0.0
    %472 = vmatprep.subr.mxu0 0.0
    %473 = vmatpush1.xpose.msra.mxu0 0.0
    %474 = vmatprep.subr.mxu0 0.0
    %475 = vmatpush1.xpose.msra.mxu0 0.0
    %476 = vmatprep.subr.mxu0 0.0
    %477 = vmatpush1.xpose.msra.mxu0 0.0
    %478 = vmatprep.subr.mxu0 0.0
    %479 = vmatpush1.xpose.msra.mxu0 0.0
    %480 = vmatprep.subr.mxu0 0.0
    %481 = vmatpush1.xpose.msra.mxu0 0.0
    %482 = vmatprep.subr.mxu0 0.0
    %483 = vmatpush1.xpose.msra.mxu0 0.0
    %484 = vmatprep.subr.mxu0 0.0
    %485 = vmatpush1.xpose.msra.mxu0 0.0
    %486 = vmatprep.subr.mxu0 0.0
    %487 = vmatpush1.xpose.msra.mxu0 0.0
    %488 = vmatprep.subr.mxu0 0.0
    %489 = vmatpush1.xpose.msra.mxu0 0.0
    %490 = vmatprep.subr.mxu0 0.0
    %491 = vmatpush1.xpose.msra.mxu0 0.0
    %492 = vmatprep.subr.mxu0 0.0
    %493 = vmatpush1.xpose.msra.mxu0 0.0
    %494 = vmatprep.subr.mxu0 0.0
    %495 = vmatpush1.xpose.msra.mxu0 0.0
    %496 = vmatprep.subr.mxu0 0.0
    %497 = vmatpush1.xpose.msra.mxu0 0.0
    %498 = vmatprep.subr.mxu0 0.0
    %499 = vmatpush1.xpose.msra.mxu0 0.0
    %500 = vmatprep.subr.mxu0 0.0
    %501 = vmatpush1.xpose.msra.mxu0 0.0
    %502 = vmatprep.subr.mxu0 0.0
    %503 = vmatpush1.xpose.msra.mxu0 0.0
    %504 = vmatprep.subr.mxu0 0.0
    %505 = vmatpush1.xpose.msra.mxu0 0.0
    %506 = vmatprep.subr.mxu0 0.0
    %507 = vmatpush1.xpose.msra.mxu0 0.0
    %508 = vmatprep.subr.mxu0 0.0
    %509 = vmatpush1.xpose.msra.mxu0 0.0
    %510 = vmatprep.subr.mxu0 0.0
    %511 = vmatpush1.xpose.msra.mxu0 0.0
    %512 = vmatprep.subr.mxu0 0.0
    %513 = vmatpush1.xpose.msra.mxu0 0.0
    %514 = vmatprep.subr.mxu0 0.0
    %515 = vmatpush1.xpose.msra.mxu0 0.0
    %516 = vmatprep.subr.mxu0 0.0
    %517 = vmatpush1.xpose.msra.mxu0 0.0
    %518 = vmatprep.mubr.f32.mxu0 0.0
    %519 = vmatmul.mubr.f32.gmra.mrb[0].mxu0 %v415
    %v520 = vpop.f32.mrb[0].mxu0
    %v521 = vadd.f32 %v389, %v520
    %v522 = vpop.f32.mrb[0].mxu0
    %523 = vmatprep.mubr.f32.mxu0 0.0
    %524 = vmatmul.mubr.f32.gmra.mrb[0].mxu0 %v418
    %v525 = vpop.f32.mrb[0].mxu0
    %v526 = vadd.f32 %v390, %v525
    %v527 = vpop.f32.mrb[0].mxu0
    %528 = vmatprep.mubr.f32.mxu0 0.0
    %529 = vmatmul.mubr.f32.gmra.mrb[0].mxu0 %v421
    %v530 = vpop.f32.mrb[0].mxu0
    %v531 = vadd.f32 %v391, %v530
    %v532 = vpop.f32.mrb[0].mxu0
    %533 = vmatprep.mubr.f32.mxu0 0.0
    %534 = vmatmul.mubr.f32.gmra.mrb[0].mxu0 %v424
    %v535 = vpop.f32.mrb[0].mxu0
    %v536 = vadd.f32 %v392, %v535
    %v537 = vpop.f32.mrb[0].mxu0
    %538 = vmatprep.mubr.f32.mxu0 0.0
    %539 = vmatmul.mubr.f32.gmra.mrb[0].mxu0 %v427
    %v540 = vpop.f32.mrb[0].mxu0
    %v541 = vadd.f32 %v393, %v540
    %v542 = vpop.f32.mrb[0].mxu0
    %543 = vmatprep.mubr.f32.mxu0 0.0
    %544 = vmatmul.mubr.f32.gmra.mrb[0].mxu0 %v430
    %v545 = vpop.f32.mrb[0].mxu0
    %v546 = vadd.f32 %v394, %v545
    %v547 = vpop.f32.mrb[0].mxu0
    %548 = vmatprep.mubr.f32.mxu0 0.0
    %549 = vmatmul.mubr.f32.gmra.mrb[0].mxu0 %v433
    %v550 = vpop.f32.mrb[0].mxu0
    %v551 = vadd.f32 %v395, %v550
    %v552 = vpop.f32.mrb[0].mxu0
    %553 = vmatprep.mubr.f32.mxu0 0.0
    %554 = vmatmul.mubr.f32.gmra.mrb[0].mxu0 %v436
    %v555 = vpop.f32.mrb[0].mxu0
    %v556 = vadd.f32 %v396, %v555
    %v557 = vpop.f32.mrb[0].mxu0
    %558 = vdwg.mxu0
    %vm559 = vcmask 523264
    %v560 = vsel %vm559, %v521, -inf
    %561 = vmax.xlane.f32.xlu0 %v560
    %v562 = vpop.xlane.xlu0 %561
    %v563 = vsel %vm559, %v526, -inf
    %564 = vmax.xlane.f32.xlu0 %v563
    %v565 = vpop.xlane.xlu0 %564
    %v566 = vsel %vm559, %v531, -inf
    %567 = vmax.xlane.f32.xlu0 %v566
    %v568 = vpop.xlane.xlu0 %567
    %v569 = vsel %vm559, %v536, -inf
    %570 = vmax.xlane.f32.xlu0 %v569
    %v571 = vpop.xlane.xlu0 %570
    %v572 = vsel %vm559, %v541, -inf
    %573 = vmax.xlane.f32.xlu0 %v572
    %v574 = vpop.xlane.xlu0 %573
    %v575 = vsel %vm559, %v546, -inf
    %576 = vmax.xlane.f32.xlu0 %v575
    %v577 = vpop.xlane.xlu0 %576
    %v578 = vsel %vm559, %v551, -inf
    %579 = vmax.xlane.f32.xlu0 %v578
    %v580 = vpop.xlane.xlu0 %579
    %v581 = vsel %vm559, %v556, -inf
    %582 = vmax.xlane.f32.xlu0 %v581
    %v583 = vpop.xlane.xlu0 %582
    %v584 = vsub.f32 %v521, %v562
    %v585 = vsub.f32 %v526, %v565
    %v586 = vsub.f32 %v531, %v568
    %v587 = vsub.f32 %v536, %v571
    %v588 = vsub.f32 %v541, %v574
    %v589 = vsub.f32 %v546, %v577
    %v590 = vsub.f32 %v551, %v580
    %v591 = vsub.f32 %v556, %v583
    %v592 = vmul.f32 %v584, 1.442695
    %v593 = vpow.pop %v592
    %v594 = vmul.f32 %v585, 1.442695
    %v595 = vpow.pop %v594
    %v596 = vmul.f32 %v586, 1.442695
    %v597 = vpow.pop %v596
    %v598 = vmul.f32 %v587, 1.442695
    %v599 = vpow.pop %v598
    %v600 = vmul.f32 %v588, 1.442695
    %v601 = vpow.pop %v600
    %v602 = vmul.f32 %v589, 1.442695
    %v603 = vpow.pop %v602
    %v604 = vmul.f32 %v590, 1.442695
    %v605 = vpow.pop %v604
    %v606 = vmul.f32 %v591, 1.442695
    %v607 = vpow.pop %v606
    %v608 = vsel %vm559, %v593, 0.0
    %609 = vadd.xlane.f32.xlu0 %v608
    %v610 = vpop.xlane.xlu0 %609
    %v611 = vsel %vm559, %v595, 0.0
    %612 = vadd.xlane.f32.xlu0 %v611
    %v613 = vpop.xlane.xlu0 %612
    %v614 = vsel %vm559, %v597, 0.0
    %615 = vadd.xlane.f32.xlu0 %v614
    %v616 = vpop.xlane.xlu0 %615
    %v617 = vsel %vm559, %v599, 0.0
    %618 = vadd.xlane.f32.xlu0 %v617
    %v619 = vpop.xlane.xlu0 %618
    %v620 = vsel %vm559, %v601, 0.0
    %621 = vadd.xlane.f32.xlu0 %v620
    %v622 = vpop.xlane.xlu0 %621
    %v623 = vsel %vm559, %v603, 0.0
    %624 = vadd.xlane.f32.xlu0 %v623
    %v625 = vpop.xlane.xlu0 %624
    %v626 = vsel %vm559, %v605, 0.0
    %627 = vadd.xlane.f32.xlu0 %v626
    %v628 = vpop.xlane.xlu0 %627
    %v629 = vsel %vm559, %v607, 0.0
    %630 = vadd.xlane.f32.xlu0 %v629
    %v631 = vpop.xlane.xlu0 %630
    %v632 = vrcp.pop %v610
    %v633 = vrcp.pop %v613
    %v634 = vrcp.pop %v616
    %v635 = vrcp.pop %v619
    %v636 = vrcp.pop %v622
    %v637 = vrcp.pop %v625
    %v638 = vrcp.pop %v628
    %v639 = vrcp.pop %v631
    %v640 = vmul.f32 %v593, %v632
    %v641 = vmul.f32 %v595, %v633
    %v642 = vmul.f32 %v597, %v634
    %v643 = vmul.f32 %v599, %v635
    %v644 = vmul.f32 %v601, %v636
    %v645 = vmul.f32 %v603, %v637
    %v646 = vmul.f32 %v605, %v638
    %v647 = vmul.f32 %v607, %v639
    %648 = vrot.lane.b32.xlu0 %v353, 64
    %v649 = vpop.permute.xlu0 %648
    %650 = vrot.lane.b32.xlu0 %v358, 64
    %v651 = vpop.permute.xlu0 %650
    %652 = vrot.lane.b32.xlu0 %v364, 64
    %v653 = vpop.permute.xlu0 %652
    %654 = vrot.lane.b32.xlu0 %v366, 64
    %v655 = vpop.permute.xlu0 %654
    %656 = vrot.lane.b32.xlu0 %v370, 64
    %v657 = vpop.permute.xlu0 %656
    %658 = vrot.lane.b32.xlu0 %v372, 64
    %v659 = vpop.permute.xlu0 %658
    %660 = vrot.lane.b32.xlu0 %v376, 64
    %v661 = vpop.permute.xlu0 %660
    %662 = vrot.lane.b32.xlu0 %v378, 64
    %v663 = vpop.permute.xlu0 %662
    %v673 = vsel %vm559, %v640, 0
    %v676 = vsel %vm559, %v641, 0
    %v679 = vsel %vm559, %v642, 0
    %v682 = vsel %vm559, %v643, 0
    %v685 = vsel %vm559, %v644, 0
    %v688 = vsel %vm559, %v645, 0
    %v691 = vsel %vm559, %v646, 0
    %v694 = vsel %vm559, %v647, 0
    %696 = vmatprep.subr.mxu0 0.0
    %697 = vmatpush1.msra.mxu0 %v649
    %698 = vmatprep.subr.mxu0 0.0
    %699 = vmatpush1.msra.mxu0 %v651
    %700 = vmatprep.subr.mxu0 0.0
    %701 = vmatpush1.msra.mxu0 %v653
    %702 = vmatprep.subr.mxu0 0.0
    %703 = vmatpush1.msra.mxu0 %v655
    %704 = vmatprep.subr.mxu0 0.0
    %705 = vmatpush1.msra.mxu0 %v657
    %706 = vmatprep.subr.mxu0 0.0
    %707 = vmatpush1.msra.mxu0 %v659
    %708 = vmatprep.subr.mxu0 0.0
    %709 = vmatpush1.msra.mxu0 %v661
    %710 = vmatprep.subr.mxu0 0.0
    %711 = vmatpush1.msra.mxu0 %v663
    %712 = vmatprep.subr.mxu0 0.0
    %713 = vmatpush1.msra.mxu0 0.0
    %714 = vmatprep.subr.mxu0 0.0
    %715 = vmatpush1.msra.mxu0 0.0
    %716 = vmatprep.subr.mxu0 0.0
    %717 = vmatpush1.msra.mxu0 0.0
    %718 = vmatprep.subr.mxu0 0.0
    %719 = vmatpush1.msra.mxu0 0.0
    %720 = vmatprep.subr.mxu0 0.0
    %721 = vmatpush1.msra.mxu0 0.0
    %722 = vmatprep.subr.mxu0 0.0
    %723 = vmatpush1.msra.mxu0 0.0
    %724 = vmatprep.subr.mxu0 0.0
    %725 = vmatpush1.msra.mxu0 0.0
    %726 = vmatprep.subr.mxu0 0.0
    %727 = vmatpush1.msra.mxu0 0.0
    %728 = vmatprep.subr.mxu0 0.0
    %729 = vmatpush1.msra.mxu0 0.0
    %730 = vmatprep.subr.mxu0 0.0
    %731 = vmatpush1.msra.mxu0 0.0
    %732 = vmatprep.subr.mxu0 0.0
    %733 = vmatpush1.msra.mxu0 0.0
    %734 = vmatprep.subr.mxu0 0.0
    %735 = vmatpush1.msra.mxu0 0.0
    %736 = vmatprep.subr.mxu0 0.0
    %737 = vmatpush1.msra.mxu0 0.0
    %738 = vmatprep.subr.mxu0 0.0
    %739 = vmatpush1.msra.mxu0 0.0
    %740 = vmatprep.subr.mxu0 0.0
    %741 = vmatpush1.msra.mxu0 0.0
    %742 = vmatprep.subr.mxu0 0.0
    %743 = vmatpush1.msra.mxu0 0.0
    %744 = vmatprep.subr.mxu0 0.0
    %745 = vmatpush1.msra.mxu0 0.0
    %746 = vmatprep.subr.mxu0 0.0
    %747 = vmatpush1.msra.mxu0 0.0
    %748 = vmatprep.subr.mxu0 0.0
    %749 = vmatpush1.msra.mxu0 0.0
    %750 = vmatprep.subr.mxu0 0.0
    %751 = vmatpush1.msra.mxu0 0.0
    %752 = vmatprep.subr.mxu0 0.0
    %753 = vmatpush1.msra.mxu0 0.0
    %754 = vmatprep.subr.mxu0 0.0
    %755 = vmatpush1.msra.mxu0 0.0
    %756 = vmatprep.subr.mxu0 0.0
    %757 = vmatpush1.msra.mxu0 0.0
    %758 = vmatprep.subr.mxu0 0.0
    %759 = vmatpush1.msra.mxu0 0.0
    %760 = vmatprep.mubr.f32.mxu0 0.0
    %761 = vmatmul.mubr.f32.gmra.mrb[0].mxu0 %v673
    %v762 = vpop.f32.mrb[0].mxu0
    %v763 = vadd.f32 0.0, %v762
    %v764 = vpop.f32.mrb[0].mxu0
    %765 = vmatprep.mubr.f32.mxu0 0.0
    %766 = vmatmul.mubr.f32.gmra.mrb[0].mxu0 %v676
    %v767 = vpop.f32.mrb[0].mxu0
    %v768 = vadd.f32 0.0, %v767
    %v769 = vpop.f32.mrb[0].mxu0
    %770 = vmatprep.mubr.f32.mxu0 0.0
    %771 = vmatmul.mubr.f32.gmra.mrb[0].mxu0 %v679
    %v772 = vpop.f32.mrb[0].mxu0
    %v773 = vadd.f32 0.0, %v772
    %v774 = vpop.f32.mrb[0].mxu0
    %775 = vmatprep.mubr.f32.mxu0 0.0
    %776 = vmatmul.mubr.f32.gmra.mrb[0].mxu0 %v682
    %v777 = vpop.f32.mrb[0].mxu0
    %v778 = vadd.f32 0.0, %v777
    %v779 = vpop.f32.mrb[0].mxu0
    %780 = vmatprep.mubr.f32.mxu0 0.0
    %781 = vmatmul.mubr.f32.gmra.mrb[0].mxu0 %v685
    %v782 = vpop.f32.mrb[0].mxu0
    %v783 = vadd.f32 0.0, %v782
    %v784 = vpop.f32.mrb[0].mxu0
    %785 = vmatprep.mubr.f32.mxu0 0.0
    %786 = vmatmul.mubr.f32.gmra.mrb[0].mxu0 %v688
    %v787 = vpop.f32.mrb[0].mxu0
    %v788 = vadd.f32 0.0, %v787
    %v789 = vpop.f32.mrb[0].mxu0
    %790 = vmatprep.mubr.f32.mxu0 0.0
    %791 = vmatmul.mubr.f32.gmra.mrb[0].mxu0 %v691
    %v792 = vpop.f32.mrb[0].mxu0
    %v793 = vadd.f32 0.0, %v792
    %v794 = vpop.f32.mrb[0].mxu0
    %795 = vmatprep.mubr.f32.mxu0 0.0
    %796 = vmatmul.mubr.f32.gmra.mrb[0].mxu0 %v694
    %v797 = vpop.f32.mrb[0].mxu0
    %v798 = vadd.f32 0.0, %v797
    %v799 = vpop.f32.mrb[0].mxu0
    %800 = vdwg.mxu0
    %803 = vrot.lane.b32.xlu0 %v773, 8
    %v804 = vpop.permute.xlu0 %803
    %805 = vrot.lane.b32.xlu0 %v778, 8
    %v806 = vpop.permute.xlu0 %805
    %811 = vrot.lane.b32.xlu0 %v783, 16
    %v812 = vpop.permute.xlu0 %811
    %813 = vrot.lane.b32.xlu0 %v788, 16
    %v814 = vpop.permute.xlu0 %813
    %819 = vrot.lane.b32.xlu0 %v793, 24
    %v820 = vpop.permute.xlu0 %819
    %821 = vrot.lane.b32.xlu0 %v798, 24
    %v822 = vpop.permute.xlu0 %821
    %v825 = vsel %vm413, %v763, %v804
    %v826 = vsel %vm413, %v768, %v806
    %vm827 = vcmask 130048
    %v828 = vsel %vm827, %v825, %v812
    %v829 = vsel %vm827, %v826, %v814
    %vm830 = vcmask 195584
    %v831 = vsel %vm830, %v828, %v820
    %v832 = vsel %vm830, %v829, %v822
    %v833 = vld [vmem:[#allocation8] sm:$0xff]
    %v834 = vld [vmem:[#allocation8 + $0x8] sm:$0xff]
    %v835 = vld [vmem:[#allocation8 + $0x10] sm:$0xff]
    %v836 = vld [vmem:[#allocation8 + $0x18] sm:$0xff]
    %v837 = vld [vmem:[#allocation10] sm:$0x1]
    %v839 = vlaneseq
    %v840 = vshrl.u32 %v839, 7
    %v841 = vsub.s32 0, %v840
    %v842 = vrot.slane %v837, %v841
    %v845 = vsel %vm229, %v831, 0
    %v848 = vsel %vm229, %v832, 0
    %850 = vmatprep.subr.mxu0 0.0
    %851 = vmatpush1.msra.mxu0 %v833
    %852 = vmatprep.subr.mxu0 0.0
    %853 = vmatpush1.msra.mxu0 %v834
    %854 = vmatprep.subr.mxu0 0.0
    %855 = vmatpush1.msra.mxu0 %v835
    %856 = vmatprep.subr.mxu0 0.0
    %857 = vmatpush1.msra.mxu0 %v836
    %858 = vmatprep.subr.mxu0 0.0
    %859 = vmatpush1.msra.mxu0 0.0
    %860 = vmatprep.subr.mxu0 0.0
    %861 = vmatpush1.msra.mxu0 0.0
    %862 = vmatprep.subr.mxu0 0.0
    %863 = vmatpush1.msra.mxu0 0.0
    %864 = vmatprep.subr.mxu0 0.0
    %865 = vmatpush1.msra.mxu0 0.0
    %866 = vmatprep.subr.mxu0 0.0
    %867 = vmatpush1.msra.mxu0 0.0
    %868 = vmatprep.subr.mxu0 0.0
    %869 = vmatpush1.msra.mxu0 0.0
    %870 = vmatprep.subr.mxu0 0.0
    %871 = vmatpush1.msra.mxu0 0.0
    %872 = vmatprep.subr.mxu0 0.0
    %873 = vmatpush1.msra.mxu0 0.0
    %874 = vmatprep.subr.mxu0 0.0
    %875 = vmatpush1.msra.mxu0 0.0
    %876 = vmatprep.subr.mxu0 0.0
    %877 = vmatpush1.msra.mxu0 0.0
    %878 = vmatprep.subr.mxu0 0.0
    %879 = vmatpush1.msra.mxu0 0.0
    %880 = vmatprep.subr.mxu0 0.0
    %881 = vmatpush1.msra.mxu0 0.0
    %882 = vmatprep.subr.mxu0 0.0
    %883 = vmatpush1.msra.mxu0 0.0
    %884 = vmatprep.subr.mxu0 0.0
    %885 = vmatpush1.msra.mxu0 0.0
    %886 = vmatprep.subr.mxu0 0.0
    %887 = vmatpush1.msra.mxu0 0.0
    %888 = vmatprep.subr.mxu0 0.0
    %889 = vmatpush1.msra.mxu0 0.0
    %890 = vmatprep.subr.mxu0 0.0
    %891 = vmatpush1.msra.mxu0 0.0
    %892 = vmatprep.subr.mxu0 0.0
    %893 = vmatpush1.msra.mxu0 0.0
    %894 = vmatprep.subr.mxu0 0.0
    %895 = vmatpush1.msra.mxu0 0.0
    %896 = vmatprep.subr.mxu0 0.0
    %897 = vmatpush1.msra.mxu0 0.0
    %898 = vmatprep.subr.mxu0 0.0
    %899 = vmatpush1.msra.mxu0 0.0
    %900 = vmatprep.subr.mxu0 0.0
    %901 = vmatpush1.msra.mxu0 0.0
    %902 = vmatprep.subr.mxu0 0.0
    %903 = vmatpush1.msra.mxu0 0.0
    %904 = vmatprep.subr.mxu0 0.0
    %905 = vmatpush1.msra.mxu0 0.0
    %906 = vmatprep.subr.mxu0 0.0
    %907 = vmatpush1.msra.mxu0 0.0
    %908 = vmatprep.subr.mxu0 0.0
    %909 = vmatpush1.msra.mxu0 0.0
    %910 = vmatprep.subr.mxu0 0.0
    %911 = vmatpush1.msra.mxu0 0.0
    %912 = vmatprep.subr.mxu0 0.0
    %913 = vmatpush1.msra.mxu0 0.0
    %914 = vmatprep.mubr.f32.mxu0 0.0
    %915 = vmatmul.mubr.f32.gmra.mrb[0].mxu0 %v845
    %v916 = vpop.f32.mrb[0].mxu0
    %v917 = vadd.f32 %v842, %v916
    %v918 = vpop.f32.mrb[0].mxu0
    %919 = vmatprep.mubr.f32.mxu0 0.0
    %920 = vmatmul.mubr.f32.gmra.mrb[0].mxu0 %v848
    %v921 = vpop.f32.mrb[0].mxu0
    %v922 = vadd.f32 %v842, %v921
    %v923 = vpop.f32.mrb[0].mxu0
    %924 = vdwg.mxu0
    %v925 = vadd.f32 %v221, %v917
    %v926 = vadd.f32 %v222, %v922
    %v927 = vsel %vm229, %v925, 0.0
    %928 = vadd.xlane.f32.xlu0 %v927
    %v929 = vpop.xlane.xlu0 %928
    %v930 = vsel %vm229, %v926, 0.0
    %931 = vadd.xlane.f32.xlu0 %v930
    %v932 = vpop.xlane.xlu0 %931
    %v933 = vmul.f32 %v929, %v236
    %v934 = vmul.f32 %v932, %v236
    %v935 = vsub.f32 %v925, %v933
    %v936 = vsub.f32 %v926, %v934
    %v937 = vmul.f32 %v935, %v935
    %v938 = vmul.f32 %v936, %v936
    %v939 = vsel %vm229, %v937, 0.0
    %940 = vadd.xlane.f32.xlu0 %v939
    %v941 = vpop.xlane.xlu0 %940
    %v942 = vsel %vm229, %v938, 0.0
    %943 = vadd.xlane.f32.xlu0 %v942
    %v944 = vpop.xlane.xlu0 %943
    %v945 = vmul.f32 %v941, %v236
    %v946 = vmul.f32 %v944, %v236
    %v947 = vlaneseq
    %v948 = vshrl.u32 %v947, 7
    %v949 = vsub.s32 1, %v948
    %v950 = vrot.slane %v227, %v949
    %v951 = vmul.f32 %v950, %v935
    %v952 = vmul.f32 %v950, %v936
    %v953 = vadd.f32 %v945, 1e-06
    %v954 = vadd.f32 %v946, 1e-06
    %v955 = vrsqrt.pop %v953
    %v956 = vrsqrt.pop %v954
    %v957 = vmul.f32 %v951, %v955
    %v958 = vmul.f32 %v952, %v956
    %v959 = vlaneseq
    %v960 = vshrl.u32 %v959, 7
    %v961 = vsub.s32 1, %v960
    %v962 = vrot.slane %v228, %v961
    %v963 = vadd.f32 %v957, %v962
    %v964 = vadd.f32 %v958, %v962
    %v965 = vld [vmem:[#allocation11] sm:$0xff]
    %v966 = vld [vmem:[#allocation11 + $0x8] sm:$0xff]
    %v967 = vld [vmem:[#allocation11 + $0x10] sm:$0xff]
    %v968 = vld [vmem:[#allocation11 + $0x18] sm:$0xff]
    %v969 = vld [vmem:[#allocation13] sm:$0x1]
    %v971 = vlaneseq
    %v972 = vshrl.u32 %v971, 7
    %v973 = vsub.s32 0, %v972
    %v974 = vrot.slane %v969, %v973
    %v977 = vsel %vm229, %v963, 0
    %v980 = vsel %vm229, %v964, 0
    %982 = vmatprep.subr.mxu0 0.0
    %983 = vmatpush1.msra.mxu0 %v965
    %984 = vmatprep.subr.mxu0 0.0
    %985 = vmatpush1.msra.mxu0 %v966
    %986 = vmatprep.subr.mxu0 0.0
    %987 = vmatpush1.msra.mxu0 %v967
    %988 = vmatprep.subr.mxu0 0.0
    %989 = vmatpush1.msra.mxu0 %v968
    %990 = vmatprep.subr.mxu0 0.0
    %991 = vmatpush1.msra.mxu0 0.0
    %992 = vmatprep.subr.mxu0 0.0
    %993 = vmatpush1.msra.mxu0 0.0
    %994 = vmatprep.subr.mxu0 0.0
    %995 = vmatpush1.msra.mxu0 0.0
    %996 = vmatprep.subr.mxu0 0.0
    %997 = vmatpush1.msra.mxu0 0.0
    %998 = vmatprep.subr.mxu0 0.0
    %999 = vmatpush1.msra.mxu0 0.0
    %1000 = vmatprep.subr.mxu0 0.0
    %1001 = vmatpush1.msra.mxu0 0.0
    %1002 = vmatprep.subr.mxu0 0.0
    %1003 = vmatpush1.msra.mxu0 0.0
    %1004 = vmatprep.subr.mxu0 0.0
    %1005 = vmatpush1.msra.mxu0 0.0
    %1006 = vmatprep.subr.mxu0 0.0
    %1007 = vmatpush1.msra.mxu0 0.0
    %1008 = vmatprep.subr.mxu0 0.0
    %1009 = vmatpush1.msra.mxu0 0.0
    %1010 = vmatprep.subr.mxu0 0.0
    %1011 = vmatpush1.msra.mxu0 0.0
    %1012 = vmatprep.subr.mxu0 0.0
    %1013 = vmatpush1.msra.mxu0 0.0
    %1014 = vmatprep.subr.mxu0 0.0
    %1015 = vmatpush1.msra.mxu0 0.0
    %1016 = vmatprep.subr.mxu0 0.0
    %1017 = vmatpush1.msra.mxu0 0.0
    %1018 = vmatprep.subr.mxu0 0.0
    %1019 = vmatpush1.msra.mxu0 0.0
    %1020 = vmatprep.subr.mxu0 0.0
    %1021 = vmatpush1.msra.mxu0 0.0
    %1022 = vmatprep.subr.mxu0 0.0
    %1023 = vmatpush1.msra.mxu0 0.0
    %1024 = vmatprep.subr.mxu0 0.0
    %1025 = vmatpush1.msra.mxu0 0.0
    %1026 = vmatprep.subr.mxu0 0.0
    %1027 = vmatpush1.msra.mxu0 0.0
    %1028 = vmatprep.subr.mxu0 0.0
    %1029 = vmatpush1.msra.mxu0 0.0
    %1030 = vmatprep.subr.mxu0 0.0
    %1031 = vmatpush1.msra.mxu0 0.0
    %1032 = vmatprep.subr.mxu0 0.0
    %1033 = vmatpush1.msra.mxu0 0.0
    %1034 = vmatprep.subr.mxu0 0.0
    %1035 = vmatpush1.msra.mxu0 0.0
    %1036 = vmatprep.subr.mxu0 0.0
    %1037 = vmatpush1.msra.mxu0 0.0
    %1038 = vmatprep.subr.mxu0 0.0
    %1039 = vmatpush1.msra.mxu0 0.0
    %1040 = vmatprep.subr.mxu0 0.0
    %1041 = vmatpush1.msra.mxu0 0.0
    %1042 = vmatprep.subr.mxu0 0.0
    %1043 = vmatpush1.msra.mxu0 0.0
    %1044 = vmatprep.subr.mxu0 0.0
    %1045 = vmatpush1.msra.mxu0 0.0
    %1046 = vmatprep.mubr.f32.mxu0 0.0
    %1047 = vmatmul.mubr.f32.gmra.mrb[0].mxu0 %v977
    %v1048 = vpop.f32.mrb[0].mxu0
    %v1049 = vadd.f32 %v974, %v1048
    %v1050 = vpop.f32.mrb[0].mxu0
    %1051 = vmatprep.mubr.f32.mxu0 0.0
    %1052 = vmatmul.mubr.f32.gmra.mrb[0].mxu0 %v980
    %v1053 = vpop.f32.mrb[0].mxu0
    %v1054 = vadd.f32 %v974, %v1053
    %v1055 = vpop.f32.mrb[0].mxu0
    %1056 = vdwg.mxu0
    %v1057 = vld [vmem:[#allocation14] sm:$0xff]
    %v1058 = vld [vmem:[#allocation14 + $0x8] sm:$0xff]
    %v1059 = vld [vmem:[#allocation14 + $0x10] sm:$0xff]
    %v1060 = vld [vmem:[#allocation14 + $0x18] sm:$0xff]
    %v1061 = vld [vmem:[#allocation16] sm:$0x1]
    %v1063 = vlaneseq
    %v1064 = vshrl.u32 %v1063, 7
    %v1065 = vsub.s32 0, %v1064
    %v1066 = vrot.slane %v1061, %v1065
    %v1069 = vsel %vm229, %v223, 0
    %v1072 = vsel %vm229, %v224, 0
    %v1075 = vsel %vm229, %v225, 0
    %v1078 = vsel %vm229, %v226, 0
    %1080 = vmatprep.subr.mxu0 0.0
    %1081 = vmatpush1.msra.mxu0 %v1057
    %1082 = vmatprep.subr.mxu0 0.0
    %1083 = vmatpush1.msra.mxu0 %v1058
    %1084 = vmatprep.subr.mxu0 0.0
    %1085 = vmatpush1.msra.mxu0 %v1059
    %1086 = vmatprep.subr.mxu0 0.0
    %1087 = vmatpush1.msra.mxu0 %v1060
    %1088 = vmatprep.subr.mxu0 0.0
    %1089 = vmatpush1.msra.mxu0 0.0
    %1090 = vmatprep.subr.mxu0 0.0
    %1091 = vmatpush1.msra.mxu0 0.0
    %1092 = vmatprep.subr.mxu0 0.0
    %1093 = vmatpush1.msra.mxu0 0.0
    %1094 = vmatprep.subr.mxu0 0.0
    %1095 = vmatpush1.msra.mxu0 0.0
    %1096 = vmatprep.subr.mxu0 0.0
    %1097 = vmatpush1.msra.mxu0 0.0
    %1098 = vmatprep.subr.mxu0 0.0
    %1099 = vmatpush1.msra.mxu0 0.0
    %1100 = vmatprep.subr.mxu0 0.0
    %1101 = vmatpush1.msra.mxu0 0.0
    %1102 = vmatprep.subr.mxu0 0.0
    %1103 = vmatpush1.msra.mxu0 0.0
    %1104 = vmatprep.subr.mxu0 0.0
    %1105 = vmatpush1.msra.mxu0 0.0
    %1106 = vmatprep.subr.mxu0 0.0
    %1107 = vmatpush1.msra.mxu0 0.0
    %1108 = vmatprep.subr.mxu0 0.0
    %1109 = vmatpush1.msra.mxu0 0.0
    %1110 = vmatprep.subr.mxu0 0.0
    %1111 = vmatpush1.msra.mxu0 0.0
    %1112 = vmatprep.subr.mxu0 0.0
    %1113 = vmatpush1.msra.mxu0 0.0
    %1114 = vmatprep.subr.mxu0 0.0
    %1115 = vmatpush1.msra.mxu0 0.0
    %1116 = vmatprep.subr.mxu0 0.0
    %1117 = vmatpush1.msra.mxu0 0.0
    %1118 = vmatprep.subr.mxu0 0.0
    %1119 = vmatpush1.msra.mxu0 0.0
    %1120 = vmatprep.subr.mxu0 0.0
    %1121 = vmatpush1.msra.mxu0 0.0
    %1122 = vmatprep.subr.mxu0 0.0
    %1123 = vmatpush1.msra.mxu0 0.0
    %1124 = vmatprep.subr.mxu0 0.0
    %1125 = vmatpush1.msra.mxu0 0.0
    %1126 = vmatprep.subr.mxu0 0.0
    %1127 = vmatpush1.msra.mxu0 0.0
    %1128 = vmatprep.subr.mxu0 0.0
    %1129 = vmatpush1.msra.mxu0 0.0
    %1130 = vmatprep.subr.mxu0 0.0
    %1131 = vmatpush1.msra.mxu0 0.0
    %1132 = vmatprep.subr.mxu0 0.0
    %1133 = vmatpush1.msra.mxu0 0.0
    %1134 = vmatprep.subr.mxu0 0.0
    %1135 = vmatpush1.msra.mxu0 0.0
    %1136 = vmatprep.subr.mxu0 0.0
    %1137 = vmatpush1.msra.mxu0 0.0
    %1138 = vmatprep.subr.mxu0 0.0
    %1139 = vmatpush1.msra.mxu0 0.0
    %1140 = vmatprep.subr.mxu0 0.0
    %1141 = vmatpush1.msra.mxu0 0.0
    %1142 = vmatprep.subr.mxu0 0.0
    %1143 = vmatpush1.msra.mxu0 0.0
    %1144 = vmatprep.mubr.f32.mxu0 0.0
    %1145 = vmatmul.mubr.f32.gmra.mrb[0].mxu0 %v1069
    %v1146 = vpop.f32.mrb[0].mxu0
    %v1147 = vadd.f32 %v1066, %v1146
    %v1148 = vpop.f32.mrb[0].mxu0
    %1149 = vmatprep.mubr.f32.mxu0 0.0
    %1150 = vmatmul.mubr.f32.gmra.mrb[0].mxu0 %v1072
    %v1151 = vpop.f32.mrb[0].mxu0
    %v1152 = vadd.f32 %v1066, %v1151
    %v1153 = vpop.f32.mrb[0].mxu0
    %1154 = vmatprep.mubr.f32.mxu0 0.0
    %1155 = vmatmul.mubr.f32.gmra.mrb[0].mxu0 %v1075
    %v1156 = vpop.f32.mrb[0].mxu0
    %v1157 = vadd.f32 %v1066, %v1156
    %v1158 = vpop.f32.mrb[0].mxu0
    %1159 = vmatprep.mubr.f32.mxu0 0.0
    %1160 = vmatmul.mubr.f32.gmra.mrb[0].mxu0 %v1078
    %v1161 = vpop.f32.mrb[0].mxu0
    %v1162 = vadd.f32 %v1066, %v1161
    %v1163 = vpop.f32.mrb[0].mxu0
    %1164 = vdwg.mxu0
    %1167 = vrot.lane.b32.xlu0 %v1049, 120
    %v1168 = vpop.permute.xlu0 %1167
    %1169 = vrot.lane.b32.xlu0 %v1054, 120
    %v1170 = vpop.permute.xlu0 %1169
    %1173 = vrot.lane.b32.xlu0 %v1049, 112
    %v1174 = vpop.permute.xlu0 %1173
    %1175 = vrot.lane.b32.xlu0 %v1054, 112
    %v1176 = vpop.permute.xlu0 %1175
    %1179 = vrot.lane.b32.xlu0 %v1049, 104
    %v1180 = vpop.permute.xlu0 %1179
    %1181 = vrot.lane.b32.xlu0 %v1054, 104
    %v1182 = vpop.permute.xlu0 %1181
    %v1185 = vmul.f32 %v1049, 0.35355338
    %v1186 = vmul.f32 %v1054, 0.35355338
    %v1187 = vmul.f32 %v1168, 0.35355338
    %v1188 = vmul.f32 %v1170, 0.35355338
    %v1189 = vmul.f32 %v1174, 0.35355338
    %v1190 = vmul.f32 %v1176, 0.35355338
    %v1191 = vmul.f32 %v1180, 0.35355338
    %v1192 = vmul.f32 %v1182, 0.35355338
    %1197 = vrot.lane.b32.xlu0 %v1147, 120
    %v1198 = vpop.permute.xlu0 %1197
    %1199 = vrot.lane.b32.xlu0 %v1152, 120
    %v1200 = vpop.permute.xlu0 %1199
    %1201 = vrot.lane.b32.xlu0 %v1157, 120
    %v1202 = vpop.permute.xlu0 %1201
    %1203 = vrot.lane.b32.xlu0 %v1162, 120
    %v1204 = vpop.permute.xlu0 %1203
    %1205 = vrot.lane.b32.xlu0 %v1147, 112
    %v1206 = vpop.permute.xlu0 %1205
    %1207 = vrot.lane.b32.xlu0 %v1152, 112
    %v1208 = vpop.permute.xlu0 %1207
    %1209 = vrot.lane.b32.xlu0 %v1157, 112
    %v1210 = vpop.permute.xlu0 %1209
    %1211 = vrot.lane.b32.xlu0 %v1162, 112
    %v1212 = vpop.permute.xlu0 %1211
    %1213 = vrot.lane.b32.xlu0 %v1147, 104
    %v1214 = vpop.permute.xlu0 %1213
    %1215 = vrot.lane.b32.xlu0 %v1152, 104
    %v1216 = vpop.permute.xlu0 %1215
    %1217 = vrot.lane.b32.xlu0 %v1157, 104
    %v1218 = vpop.permute.xlu0 %1217
    %1219 = vrot.lane.b32.xlu0 %v1162, 104
    %v1220 = vpop.permute.xlu0 %1219
    %v1221 = vld [vmem:[%s19] sm:$0xff]
    %v1222 = vld [vmem:[%s19 + $0x8] sm:$0xff]
    %v1223 = vld [vmem:[%s19 + $0x10] sm:$0xff]
    %v1224 = vld [vmem:[%s19 + $0x18] sm:$0xff]
    %v1225 = vld [vmem:[%s19 + $0x20] sm:$0xff]
    %v1226 = vld [vmem:[%s19 + $0x28] sm:$0xff]
    %v1227 = vld [vmem:[%s19 + $0x30] sm:$0xff]
    %v1228 = vld [vmem:[%s19 + $0x38] sm:$0xff]
    %v1230 = vsel %vm413, %v1185, 0
    %v1233 = vsel %vm413, %v1186, 0
    %v1236 = vsel %vm413, %v1187, 0
    %v1239 = vsel %vm413, %v1188, 0
    %v1242 = vsel %vm413, %v1189, 0
    %v1245 = vsel %vm413, %v1190, 0
    %v1248 = vsel %vm413, %v1191, 0
    %v1251 = vsel %vm413, %v1192, 0
    %v1253 = vsel %vm413, %v1147, 0
    %v1255 = vsel %vm413, %v1152, 0
    %v1257 = vsel %vm413, %v1157, 0
    %v1259 = vsel %vm413, %v1162, 0
    %v1261 = vsel %vm413, %v1198, 0
    %v1263 = vsel %vm413, %v1200, 0
    %v1265 = vsel %vm413, %v1202, 0
    %v1267 = vsel %vm413, %v1204, 0
    %v1269 = vsel %vm413, %v1206, 0
    %v1271 = vsel %vm413, %v1208, 0
    %v1273 = vsel %vm413, %v1210, 0
    %v1275 = vsel %vm413, %v1212, 0
    %v1277 = vsel %vm413, %v1214, 0
    %v1279 = vsel %vm413, %v1216, 0
    %v1281 = vsel %vm413, %v1218, 0
    %v1283 = vsel %vm413, %v1220, 0
    %1285 = vmatprep.subr.mxu0 0.0
    %1286 = vmatpush1.xpose.msra.mxu0 %v1253
    %1287 = vmatprep.subr.mxu0 0.0
    %1288 = vmatpush1.xpose.msra.mxu0 %v1255
    %1289 = vmatprep.subr.mxu0 0.0
    %1290 = vmatpush1.xpose.msra.mxu0 %v1257
    %1291 = vmatprep.subr.mxu0 0.0
    %1292 = vmatpush1.xpose.msra.mxu0 %v1259
    %1293 = vmatprep.subr.mxu0 0.0
    %1294 = vmatpush1.xpose.msra.mxu0 %v1261
    %1295 = vmatprep.subr.mxu0 0.0
    %1296 = vmatpush1.xpose.msra.mxu0 %v1263
    %1297 = vmatprep.subr.mxu0 0.0
    %1298 = vmatpush1.xpose.msra.mxu0 %v1265
    %1299 = vmatprep.subr.mxu0 0.0
    %1300 = vmatpush1.xpose.msra.mxu0 %v1267
    %1301 = vmatprep.subr.mxu0 0.0
    %1302 = vmatpush1.xpose.msra.mxu0 %v1269
    %1303 = vmatprep.subr.mxu0 0.0
    %1304 = vmatpush1.xpose.msra.mxu0 %v1271
    %1305 = vmatprep.subr.mxu0 0.0
    %1306 = vmatpush1.xpose.msra.mxu0 %v1273
    %1307 = vmatprep.subr.mxu0 0.0
    %1308 = vmatpush1.xpose.msra.mxu0 %v1275
    %1309 = vmatprep.subr.mxu0 0.0
    %1310 = vmatpush1.xpose.msra.mxu0 %v1277
    %1311 = vmatprep.subr.mxu0 0.0
    %1312 = vmatpush1.xpose.msra.mxu0 %v1279
    %1313 = vmatprep.subr.mxu0 0.0
    %1314 = vmatpush1.xpose.msra.mxu0 %v1281
    %1315 = vmatprep.subr.mxu0 0.0
    %1316 = vmatpush1.xpose.msra.mxu0 %v1283
    %1317 = vmatprep.subr.mxu0 0.0
    %1318 = vmatpush1.xpose.msra.mxu0 0.0
    %1319 = vmatprep.subr.mxu0 0.0
    %1320 = vmatpush1.xpose.msra.mxu0 0.0
    %1321 = vmatprep.subr.mxu0 0.0
    %1322 = vmatpush1.xpose.msra.mxu0 0.0
    %1323 = vmatprep.subr.mxu0 0.0
    %1324 = vmatpush1.xpose.msra.mxu0 0.0
    %1325 = vmatprep.subr.mxu0 0.0
    %1326 = vmatpush1.xpose.msra.mxu0 0.0
    %1327 = vmatprep.subr.mxu0 0.0
    %1328 = vmatpush1.xpose.msra.mxu0 0.0
    %1329 = vmatprep.subr.mxu0 0.0
    %1330 = vmatpush1.xpose.msra.mxu0 0.0
    %1331 = vmatprep.subr.mxu0 0.0
    %1332 = vmatpush1.xpose.msra.mxu0 0.0
    %1333 = vmatprep.subr.mxu0 0.0
    %1334 = vmatpush1.xpose.msra.mxu0 0.0
    %1335 = vmatprep.subr.mxu0 0.0
    %1336 = vmatpush1.xpose.msra.mxu0 0.0
    %1337 = vmatprep.subr.mxu0 0.0
    %1338 = vmatpush1.xpose.msra.mxu0 0.0
    %1339 = vmatprep.subr.mxu0 0.0
    %1340 = vmatpush1.xpose.msra.mxu0 0.0
    %1341 = vmatprep.subr.mxu0 0.0
    %1342 = vmatpush1.xpose.msra.mxu0 0.0
    %1343 = vmatprep.subr.mxu0 0.0
    %1344 = vmatpush1.xpose.msra.mxu0 0.0
    %1345 = vmatprep.subr.mxu0 0.0
    %1346 = vmatpush1.xpose.msra.mxu0 0.0
    %1347 = vmatprep.subr.mxu0 0.0
    %1348 = vmatpush1.xpose.msra.mxu0 0.0
    %1349 = vmatprep.mubr.f32.mxu0 0.0
    %1350 = vmatmul.mubr.f32.gmra.mrb[0].mxu0 %v1230
    %v1351 = vpop.f32.mrb[0].mxu0
    %v1352 = vadd.f32 %v1221, %v1351
    %v1353 = vpop.f32.mrb[0].mxu0
    %1354 = vmatprep.mubr.f32.mxu0 0.0
    %1355 = vmatmul.mubr.f32.gmra.mrb[0].mxu0 %v1233
    %v1356 = vpop.f32.mrb[0].mxu0
    %v1357 = vadd.f32 %v1222, %v1356
    %v1358 = vpop.f32.mrb[0].mxu0
    %1359 = vmatprep.mubr.f32.mxu0 0.0
    %1360 = vmatmul.mubr.f32.gmra.mrb[0].mxu0 %v1236
    %v1361 = vpop.f32.mrb[0].mxu0
    %v1362 = vadd.f32 %v1223, %v1361
    %v1363 = vpop.f32.mrb[0].mxu0
    %1364 = vmatprep.mubr.f32.mxu0 0.0
    %1365 = vmatmul.mubr.f32.gmra.mrb[0].mxu0 %v1239
    %v1366 = vpop.f32.mrb[0].mxu0
    %v1367 = vadd.f32 %v1224, %v1366
    %v1368 = vpop.f32.mrb[0].mxu0
    %1369 = vmatprep.mubr.f32.mxu0 0.0
    %1370 = vmatmul.mubr.f32.gmra.mrb[0].mxu0 %v1242
    %v1371 = vpop.f32.mrb[0].mxu0
    %v1372 = vadd.f32 %v1225, %v1371
    %v1373 = vpop.f32.mrb[0].mxu0
    %1374 = vmatprep.mubr.f32.mxu0 0.0
    %1375 = vmatmul.mubr.f32.gmra.mrb[0].mxu0 %v1245
    %v1376 = vpop.f32.mrb[0].mxu0
    %v1377 = vadd.f32 %v1226, %v1376
    %v1378 = vpop.f32.mrb[0].mxu0
    %1379 = vmatprep.mubr.f32.mxu0 0.0
    %1380 = vmatmul.mubr.f32.gmra.mrb[0].mxu0 %v1248
    %v1381 = vpop.f32.mrb[0].mxu0
    %v1382 = vadd.f32 %v1227, %v1381
    %v1383 = vpop.f32.mrb[0].mxu0
    %1384 = vmatprep.mubr.f32.mxu0 0.0
    %1385 = vmatmul.mubr.f32.gmra.mrb[0].mxu0 %v1251
    %v1386 = vpop.f32.mrb[0].mxu0
    %v1387 = vadd.f32 %v1228, %v1386
    %v1388 = vpop.f32.mrb[0].mxu0
    %1389 = vdwg.mxu0
    %1390 = vmax.xlane.f32.xlu0 %v1352
    %v1391 = vpop.xlane.xlu0 %1390
    %1392 = vmax.xlane.f32.xlu0 %v1357
    %v1393 = vpop.xlane.xlu0 %1392
    %1394 = vmax.xlane.f32.xlu0 %v1362
    %v1395 = vpop.xlane.xlu0 %1394
    %1396 = vmax.xlane.f32.xlu0 %v1367
    %v1397 = vpop.xlane.xlu0 %1396
    %1398 = vmax.xlane.f32.xlu0 %v1372
    %v1399 = vpop.xlane.xlu0 %1398
    %1400 = vmax.xlane.f32.xlu0 %v1377
    %v1401 = vpop.xlane.xlu0 %1400
    %1402 = vmax.xlane.f32.xlu0 %v1382
    %v1403 = vpop.xlane.xlu0 %1402
    %1404 = vmax.xlane.f32.xlu0 %v1387
    %v1405 = vpop.xlane.xlu0 %1404
    %v1406 = vsub.f32 %v1352, %v1391
    %v1407 = vsub.f32 %v1357, %v1393
    %v1408 = vsub.f32 %v1362, %v1395
    %v1409 = vsub.f32 %v1367, %v1397
    %v1410 = vsub.f32 %v1372, %v1399
    %v1411 = vsub.f32 %v1377, %v1401
    %v1412 = vsub.f32 %v1382, %v1403
    %v1413 = vsub.f32 %v1387, %v1405
    %v1414 = vmul.f32 %v1406, 1.442695
    %v1415 = vpow.pop %v1414
    %v1416 = vmul.f32 %v1407, 1.442695
    %v1417 = vpow.pop %v1416
    %v1418 = vmul.f32 %v1408, 1.442695
    %v1419 = vpow.pop %v1418
    %v1420 = vmul.f32 %v1409, 1.442695
    %v1421 = vpow.pop %v1420
    %v1422 = vmul.f32 %v1410, 1.442695
    %v1423 = vpow.pop %v1422
    %v1424 = vmul.f32 %v1411, 1.442695
    %v1425 = vpow.pop %v1424
    %v1426 = vmul.f32 %v1412, 1.442695
    %v1427 = vpow.pop %v1426
    %v1428 = vmul.f32 %v1413, 1.442695
    %v1429 = vpow.pop %v1428
    %1430 = vadd.xlane.f32.xlu0 %v1415
    %v1431 = vpop.xlane.xlu0 %1430
    %1432 = vadd.xlane.f32.xlu0 %v1417
    %v1433 = vpop.xlane.xlu0 %1432
    %1434 = vadd.xlane.f32.xlu0 %v1419
    %v1435 = vpop.xlane.xlu0 %1434
    %1436 = vadd.xlane.f32.xlu0 %v1421
    %v1437 = vpop.xlane.xlu0 %1436
    %1438 = vadd.xlane.f32.xlu0 %v1423
    %v1439 = vpop.xlane.xlu0 %1438
    %1440 = vadd.xlane.f32.xlu0 %v1425
    %v1441 = vpop.xlane.xlu0 %1440
    %1442 = vadd.xlane.f32.xlu0 %v1427
    %v1443 = vpop.xlane.xlu0 %1442
    %1444 = vadd.xlane.f32.xlu0 %v1429
    %v1445 = vpop.xlane.xlu0 %1444
    %v1446 = vrcp.pop %v1431
    %v1447 = vrcp.pop %v1433
    %v1448 = vrcp.pop %v1435
    %v1449 = vrcp.pop %v1437
    %v1450 = vrcp.pop %v1439
    %v1451 = vrcp.pop %v1441
    %v1452 = vrcp.pop %v1443
    %v1453 = vrcp.pop %v1445
    %v1454 = vmul.f32 %v1415, %v1446
    %v1455 = vmul.f32 %v1417, %v1447
    %v1456 = vmul.f32 %v1419, %v1448
    %v1457 = vmul.f32 %v1421, %v1449
    %v1458 = vmul.f32 %v1423, %v1450
    %v1459 = vmul.f32 %v1425, %v1451
    %v1460 = vmul.f32 %v1427, %v1452
    %v1461 = vmul.f32 %v1429, %v1453
    %1462 = vrot.lane.b32.xlu0 %v1147, 96
    %v1463 = vpop.permute.xlu0 %1462
    %1464 = vrot.lane.b32.xlu0 %v1152, 96
    %v1465 = vpop.permute.xlu0 %1464
    %1466 = vrot.lane.b32.xlu0 %v1157, 96
    %v1467 = vpop.permute.xlu0 %1466
    %1468 = vrot.lane.b32.xlu0 %v1162, 96
    %v1469 = vpop.permute.xlu0 %1468
    %1470 = vrot.lane.b32.xlu0 %v1198, 96
    %v1471 = vpop.permute.xlu0 %1470
    %1472 = vrot.lane.b32.xlu0 %v1200, 96
    %v1473 = vpop.permute.xlu0 %1472
    %1474 = vrot.lane.b32.xlu0 %v1202, 96
    %v1475 = vpop.permute.xlu0 %1474
    %1476 = vrot.lane.b32.xlu0 %v1204, 96
    %v1477 = vpop.permute.xlu0 %1476
    %1478 = vrot.lane.b32.xlu0 %v1206, 96
    %v1479 = vpop.permute.xlu0 %1478
    %1480 = vrot.lane.b32.xlu0 %v1208, 96
    %v1481 = vpop.permute.xlu0 %1480
    %1482 = vrot.lane.b32.xlu0 %v1210, 96
    %v1483 = vpop.permute.xlu0 %1482
    %1484 = vrot.lane.b32.xlu0 %v1212, 96
    %v1485 = vpop.permute.xlu0 %1484
    %1486 = vrot.lane.b32.xlu0 %v1214, 96
    %v1487 = vpop.permute.xlu0 %1486
    %1488 = vrot.lane.b32.xlu0 %v1216, 96
    %v1489 = vpop.permute.xlu0 %1488
    %1490 = vrot.lane.b32.xlu0 %v1218, 96
    %v1491 = vpop.permute.xlu0 %1490
    %1492 = vrot.lane.b32.xlu0 %v1220, 96
    %v1493 = vpop.permute.xlu0 %1492
    %1510 = vmatprep.subr.mxu0 0.0
    %1511 = vmatpush1.msra.mxu0 %v1463
    %1512 = vmatprep.subr.mxu0 0.0
    %1513 = vmatpush1.msra.mxu0 %v1465
    %1514 = vmatprep.subr.mxu0 0.0
    %1515 = vmatpush1.msra.mxu0 %v1467
    %1516 = vmatprep.subr.mxu0 0.0
    %1517 = vmatpush1.msra.mxu0 %v1469
    %1518 = vmatprep.subr.mxu0 0.0
    %1519 = vmatpush1.msra.mxu0 %v1471
    %1520 = vmatprep.subr.mxu0 0.0
    %1521 = vmatpush1.msra.mxu0 %v1473
    %1522 = vmatprep.subr.mxu0 0.0
    %1523 = vmatpush1.msra.mxu0 %v1475
    %1524 = vmatprep.subr.mxu0 0.0
    %1525 = vmatpush1.msra.mxu0 %v1477
    %1526 = vmatprep.subr.mxu0 0.0
    %1527 = vmatpush1.msra.mxu0 %v1479
    %1528 = vmatprep.subr.mxu0 0.0
    %1529 = vmatpush1.msra.mxu0 %v1481
    %1530 = vmatprep.subr.mxu0 0.0
    %1531 = vmatpush1.msra.mxu0 %v1483
    %1532 = vmatprep.subr.mxu0 0.0
    %1533 = vmatpush1.msra.mxu0 %v1485
    %1534 = vmatprep.subr.mxu0 0.0
    %1535 = vmatpush1.msra.mxu0 %v1487
    %1536 = vmatprep.subr.mxu0 0.0
    %1537 = vmatpush1.msra.mxu0 %v1489
    %1538 = vmatprep.subr.mxu0 0.0
    %1539 = vmatpush1.msra.mxu0 %v1491
    %1540 = vmatprep.subr.mxu0 0.0
    %1541 = vmatpush1.msra.mxu0 %v1493
    %1542 = vmatprep.subr.mxu0 0.0
    %1543 = vmatpush1.msra.mxu0 0.0
    %1544 = vmatprep.subr.mxu0 0.0
    %1545 = vmatpush1.msra.mxu0 0.0
    %1546 = vmatprep.subr.mxu0 0.0
    %1547 = vmatpush1.msra.mxu0 0.0
    %1548 = vmatprep.subr.mxu0 0.0
    %1549 = vmatpush1.msra.mxu0 0.0
    %1550 = vmatprep.subr.mxu0 0.0
    %1551 = vmatpush1.msra.mxu0 0.0
    %1552 = vmatprep.subr.mxu0 0.0
    %1553 = vmatpush1.msra.mxu0 0.0
    %1554 = vmatprep.subr.mxu0 0.0
    %1555 = vmatpush1.msra.mxu0 0.0
    %1556 = vmatprep.subr.mxu0 0.0
    %1557 = vmatpush1.msra.mxu0 0.0
    %1558 = vmatprep.subr.mxu0 0.0
    %1559 = vmatpush1.msra.mxu0 0.0
    %1560 = vmatprep.subr.mxu0 0.0
    %1561 = vmatpush1.msra.mxu0 0.0
    %1562 = vmatprep.subr.mxu0 0.0
    %1563 = vmatpush1.msra.mxu0 0.0
    %1564 = vmatprep.subr.mxu0 0.0
    %1565 = vmatpush1.msra.mxu0 0.0
    %1566 = vmatprep.subr.mxu0 0.0
    %1567 = vmatpush1.msra.mxu0 0.0
    %1568 = vmatprep.subr.mxu0 0.0
    %1569 = vmatpush1.msra.mxu0 0.0
    %1570 = vmatprep.subr.mxu0 0.0
    %1571 = vmatpush1.msra.mxu0 0.0
    %1572 = vmatprep.subr.mxu0 0.0
    %1573 = vmatpush1.msra.mxu0 0.0
    %1574 = vmatprep.mubr.f32.mxu0 0.0
    %1575 = vmatmul.mubr.f32.gmra.mrb[0].mxu0 %v1454
    %v1576 = vpop.f32.mrb[0].mxu0
    %v1577 = vadd.f32 0.0, %v1576
    %v1578 = vpop.f32.mrb[0].mxu0
    %1579 = vmatprep.mubr.f32.mxu0 0.0
    %1580 = vmatmul.mubr.f32.gmra.mrb[0].mxu0 %v1455
    %v1581 = vpop.f32.mrb[0].mxu0
    %v1582 = vadd.f32 0.0, %v1581
    %v1583 = vpop.f32.mrb[0].mxu0
    %1584 = vmatprep.mubr.f32.mxu0 0.0
    %1585 = vmatmul.mubr.f32.gmra.mrb[0].mxu0 %v1456
    %v1586 = vpop.f32.mrb[0].mxu0
    %v1587 = vadd.f32 0.0, %v1586
    %v1588 = vpop.f32.mrb[0].mxu0
    %1589 = vmatprep.mubr.f32.mxu0 0.0
    %1590 = vmatmul.mubr.f32.gmra.mrb[0].mxu0 %v1457
    %v1591 = vpop.f32.mrb[0].mxu0
    %v1592 = vadd.f32 0.0, %v1591
    %v1593 = vpop.f32.mrb[0].mxu0
    %1594 = vmatprep.mubr.f32.mxu0 0.0
    %1595 = vmatmul.mubr.f32.gmra.mrb[0].mxu0 %v1458
    %v1596 = vpop.f32.mrb[0].mxu0
    %v1597 = vadd.f32 0.0, %v1596
    %v1598 = vpop.f32.mrb[0].mxu0
    %1599 = vmatprep.mubr.f32.mxu0 0.0
    %1600 = vmatmul.mubr.f32.gmra.mrb[0].mxu0 %v1459
    %v1601 = vpop.f32.mrb[0].mxu0
    %v1602 = vadd.f32 0.0, %v1601
    %v1603 = vpop.f32.mrb[0].mxu0
    %1604 = vmatprep.mubr.f32.mxu0 0.0
    %1605 = vmatmul.mubr.f32.gmra.mrb[0].mxu0 %v1460
    %v1606 = vpop.f32.mrb[0].mxu0
    %v1607 = vadd.f32 0.0, %v1606
    %v1608 = vpop.f32.mrb[0].mxu0
    %1609 = vmatprep.mubr.f32.mxu0 0.0
    %1610 = vmatmul.mubr.f32.gmra.mrb[0].mxu0 %v1461
    %v1611 = vpop.f32.mrb[0].mxu0
    %v1612 = vadd.f32 0.0, %v1611
    %v1613 = vpop.f32.mrb[0].mxu0
    %1614 = vdwg.mxu0
    %1617 = vrot.lane.b32.xlu0 %v1587, 8
    %v1618 = vpop.permute.xlu0 %1617
    %1619 = vrot.lane.b32.xlu0 %v1592, 8
    %v1620 = vpop.permute.xlu0 %1619
    %1625 = vrot.lane.b32.xlu0 %v1597, 16
    %v1626 = vpop.permute.xlu0 %1625
    %1627 = vrot.lane.b32.xlu0 %v1602, 16
    %v1628 = vpop.permute.xlu0 %1627
    %1633 = vrot.lane.b32.xlu0 %v1607, 24
    %v1634 = vpop.permute.xlu0 %1633
    %1635 = vrot.lane.b32.xlu0 %v1612, 24
    %v1636 = vpop.permute.xlu0 %1635
    %v1639 = vsel %vm413, %v1577, %v1618
    %v1640 = vsel %vm413, %v1582, %v1620
    %v1641 = vsel %vm827, %v1639, %v1626
    %v1642 = vsel %vm827, %v1640, %v1628
    %v1643 = vsel %vm830, %v1641, %v1634
    %v1644 = vsel %vm830, %v1642, %v1636
    %v1645 = vld [vmem:[#allocation17] sm:$0xff]
    %v1646 = vld [vmem:[#allocation17 + $0x8] sm:$0xff]
    %v1647 = vld [vmem:[#allocation17 + $0x10] sm:$0xff]
    %v1648 = vld [vmem:[#allocation17 + $0x18] sm:$0xff]
    %v1649 = vld [vmem:[#allocation19] sm:$0x1]
    %v1651 = vlaneseq
    %v1652 = vshrl.u32 %v1651, 7
    %v1653 = vsub.s32 0, %v1652
    %v1654 = vrot.slane %v1649, %v1653
    %v1657 = vsel %vm229, %v1643, 0
    %v1660 = vsel %vm229, %v1644, 0
    %1662 = vmatprep.subr.mxu0 0.0
    %1663 = vmatpush1.msra.mxu0 %v1645
    %1664 = vmatprep.subr.mxu0 0.0
    %1665 = vmatpush1.msra.mxu0 %v1646
    %1666 = vmatprep.subr.mxu0 0.0
    %1667 = vmatpush1.msra.mxu0 %v1647
    %1668 = vmatprep.subr.mxu0 0.0
    %1669 = vmatpush1.msra.mxu0 %v1648
    %1670 = vmatprep.subr.mxu0 0.0
    %1671 = vmatpush1.msra.mxu0 0.0
    %1672 = vmatprep.subr.mxu0 0.0
    %1673 = vmatpush1.msra.mxu0 0.0
    %1674 = vmatprep.subr.mxu0 0.0
    %1675 = vmatpush1.msra.mxu0 0.0
    %1676 = vmatprep.subr.mxu0 0.0
    %1677 = vmatpush1.msra.mxu0 0.0
    %1678 = vmatprep.subr.mxu0 0.0
    %1679 = vmatpush1.msra.mxu0 0.0
    %1680 = vmatprep.subr.mxu0 0.0
    %1681 = vmatpush1.msra.mxu0 0.0
    %1682 = vmatprep.subr.mxu0 0.0
    %1683 = vmatpush1.msra.mxu0 0.0
    %1684 = vmatprep.subr.mxu0 0.0
    %1685 = vmatpush1.msra.mxu0 0.0
    %1686 = vmatprep.subr.mxu0 0.0
    %1687 = vmatpush1.msra.mxu0 0.0
    %1688 = vmatprep.subr.mxu0 0.0
    %1689 = vmatpush1.msra.mxu0 0.0
    %1690 = vmatprep.subr.mxu0 0.0
    %1691 = vmatpush1.msra.mxu0 0.0
    %1692 = vmatprep.subr.mxu0 0.0
    %1693 = vmatpush1.msra.mxu0 0.0
    %1694 = vmatprep.subr.mxu0 0.0
    %1695 = vmatpush1.msra.mxu0 0.0
    %1696 = vmatprep.subr.mxu0 0.0
    %1697 = vmatpush1.msra.mxu0 0.0
    %1698 = vmatprep.subr.mxu0 0.0
    %1699 = vmatpush1.msra.mxu0 0.0
    %1700 = vmatprep.subr.mxu0 0.0
    %1701 = vmatpush1.msra.mxu0 0.0
    %1702 = vmatprep.subr.mxu0 0.0
    %1703 = vmatpush1.msra.mxu0 0.0
    %1704 = vmatprep.subr.mxu0 0.0
    %1705 = vmatpush1.msra.mxu0 0.0
    %1706 = vmatprep.subr.mxu0 0.0
    %1707 = vmatpush1.msra.mxu0 0.0
    %1708 = vmatprep.subr.mxu0 0.0
    %1709 = vmatpush1.msra.mxu0 0.0
    %1710 = vmatprep.subr.mxu0 0.0
    %1711 = vmatpush1.msra.mxu0 0.0
    %1712 = vmatprep.subr.mxu0 0.0
    %1713 = vmatpush1.msra.mxu0 0.0
    %1714 = vmatprep.subr.mxu0 0.0
    %1715 = vmatpush1.msra.mxu0 0.0
    %1716 = vmatprep.subr.mxu0 0.0
    %1717 = vmatpush1.msra.mxu0 0.0
    %1718 = vmatprep.subr.mxu0 0.0
    %1719 = vmatpush1.msra.mxu0 0.0
    %1720 = vmatprep.subr.mxu0 0.0
    %1721 = vmatpush1.msra.mxu0 0.0
    %1722 = vmatprep.subr.mxu0 0.0
    %1723 = vmatpush1.msra.mxu0 0.0
    %1724 = vmatprep.subr.mxu0 0.0
    %1725 = vmatpush1.msra.mxu0 0.0
    %1726 = vmatprep.mubr.f32.mxu0 0.0
    %1727 = vmatmul.mubr.f32.gmra.mrb[0].mxu0 %v1657
    %v1728 = vpop.f32.mrb[0].mxu0
    %v1729 = vadd.f32 %v1654, %v1728
    %v1730 = vpop.f32.mrb[0].mxu0
    %1731 = vmatprep.mubr.f32.mxu0 0.0
    %1732 = vmatmul.mubr.f32.gmra.mrb[0].mxu0 %v1660
    %v1733 = vpop.f32.mrb[0].mxu0
    %v1734 = vadd.f32 %v1654, %v1733
    %v1735 = vpop.f32.mrb[0].mxu0
    %1736 = vdwg.mxu0
    %v1737 = vadd.f32 %v925, %v1729
    %v1738 = vadd.f32 %v926, %v1734
    %v1739 = vsel %vm229, %v1737, 0.0
    %1740 = vadd.xlane.f32.xlu0 %v1739
    %v1741 = vpop.xlane.xlu0 %1740
    %v1742 = vsel %vm229, %v1738, 0.0
    %1743 = vadd.xlane.f32.xlu0 %v1742
    %v1744 = vpop.xlane.xlu0 %1743
    %v1745 = vmul.f32 %v1741, %v236
    %v1746 = vmul.f32 %v1744, %v236
    %v1747 = vsub.f32 %v1737, %v1745
    %v1748 = vsub.f32 %v1738, %v1746
    %v1749 = vmul.f32 %v1747, %v1747
    %v1750 = vmul.f32 %v1748, %v1748
    %v1751 = vsel %vm229, %v1749, 0.0
    %1752 = vadd.xlane.f32.xlu0 %v1751
    %v1753 = vpop.xlane.xlu0 %1752
    %v1754 = vsel %vm229, %v1750, 0.0
    %1755 = vadd.xlane.f32.xlu0 %v1754
    %v1756 = vpop.xlane.xlu0 %1755
    %v1757 = vmul.f32 %v1753, %v236
    %v1758 = vmul.f32 %v1756, %v236
    %v1759 = vlaneseq
    %v1760 = vshrl.u32 %v1759, 7
    %v1761 = vsub.s32 2, %v1760
    %v1762 = vrot.slane %v227, %v1761
    %v1763 = vmul.f32 %v1762, %v1747
    %v1764 = vmul.f32 %v1762, %v1748
    %v1765 = vadd.f32 %v1757, 1e-06
    %v1766 = vadd.f32 %v1758, 1e-06
    %v1767 = vrsqrt.pop %v1765
    %v1768 = vrsqrt.pop %v1766
    %v1769 = vmul.f32 %v1763, %v1767
    %v1770 = vmul.f32 %v1764, %v1768
    %v1771 = vlaneseq
    %v1772 = vshrl.u32 %v1771, 7
    %v1773 = vsub.s32 2, %v1772
    %v1774 = vrot.slane %v228, %v1773
    %v1775 = vadd.f32 %v1769, %v1774
    %v1776 = vadd.f32 %v1770, %v1774
    %v1777 = vld [vmem:[#allocation20] sm:$0xff]
    %v1778 = vld [vmem:[#allocation20 + $0x8] sm:$0xff]
    %v1779 = vld [vmem:[#allocation20 + $0x10] sm:$0xff]
    %v1780 = vld [vmem:[#allocation20 + $0x18] sm:$0xff]
    %v1781 = vld [vmem:[%s13] sm:$0x1]
    %v1783 = vlaneseq
    %v1784 = vshrl.u32 %v1783, 7
    %v1785 = vsub.s32 0, %v1784
    %v1786 = vrot.slane %v1781, %v1785
    %v1789 = vsel %vm229, %v1775, 0
    %v1792 = vsel %vm229, %v1776, 0
    %1794 = vmatprep.subr.mxu0 0.0
    %1795 = vmatpush1.msra.mxu0 %v1777
    %1796 = vmatprep.subr.mxu0 0.0
    %1797 = vmatpush1.msra.mxu0 %v1778
    %1798 = vmatprep.subr.mxu0 0.0
    %1799 = vmatpush1.msra.mxu0 %v1779
    %1800 = vmatprep.subr.mxu0 0.0
    %1801 = vmatpush1.msra.mxu0 %v1780
    %1802 = vmatprep.subr.mxu0 0.0
    %1803 = vmatpush1.msra.mxu0 0.0
    %1804 = vmatprep.subr.mxu0 0.0
    %1805 = vmatpush1.msra.mxu0 0.0
    %1806 = vmatprep.subr.mxu0 0.0
    %1807 = vmatpush1.msra.mxu0 0.0
    %1808 = vmatprep.subr.mxu0 0.0
    %1809 = vmatpush1.msra.mxu0 0.0
    %1810 = vmatprep.subr.mxu0 0.0
    %1811 = vmatpush1.msra.mxu0 0.0
    %1812 = vmatprep.subr.mxu0 0.0
    %1813 = vmatpush1.msra.mxu0 0.0
    %1814 = vmatprep.subr.mxu0 0.0
    %1815 = vmatpush1.msra.mxu0 0.0
    %1816 = vmatprep.subr.mxu0 0.0
    %1817 = vmatpush1.msra.mxu0 0.0
    %1818 = vmatprep.subr.mxu0 0.0
    %1819 = vmatpush1.msra.mxu0 0.0
    %1820 = vmatprep.subr.mxu0 0.0
    %1821 = vmatpush1.msra.mxu0 0.0
    %1822 = vmatprep.subr.mxu0 0.0
    %1823 = vmatpush1.msra.mxu0 0.0
    %1824 = vmatprep.subr.mxu0 0.0
    %1825 = vmatpush1.msra.mxu0 0.0
    %1826 = vmatprep.subr.mxu0 0.0
    %1827 = vmatpush1.msra.mxu0 0.0
    %1828 = vmatprep.subr.mxu0 0.0
    %1829 = vmatpush1.msra.mxu0 0.0
    %1830 = vmatprep.subr.mxu0 0.0
    %1831 = vmatpush1.msra.mxu0 0.0
    %1832 = vmatprep.subr.mxu0 0.0
    %1833 = vmatpush1.msra.mxu0 0.0
    %1834 = vmatprep.subr.mxu0 0.0
    %1835 = vmatpush1.msra.mxu0 0.0
    %1836 = vmatprep.subr.mxu0 0.0
    %1837 = vmatpush1.msra.mxu0 0.0
    %1838 = vmatprep.subr.mxu0 0.0
    %1839 = vmatpush1.msra.mxu0 0.0
    %1840 = vmatprep.subr.mxu0 0.0
    %1841 = vmatpush1.msra.mxu0 0.0
    %1842 = vmatprep.subr.mxu0 0.0
    %1843 = vmatpush1.msra.mxu0 0.0
    %1844 = vmatprep.subr.mxu0 0.0
    %1845 = vmatpush1.msra.mxu0 0.0
    %1846 = vmatprep.subr.mxu0 0.0
    %1847 = vmatpush1.msra.mxu0 0.0
    %1848 = vmatprep.subr.mxu0 0.0
    %1849 = vmatpush1.msra.mxu0 0.0
    %1850 = vmatprep.subr.mxu0 0.0
    %1851 = vmatpush1.msra.mxu0 0.0
    %1852 = vmatprep.subr.mxu0 0.0
    %1853 = vmatpush1.msra.mxu0 0.0
    %1854 = vmatprep.subr.mxu0 0.0
    %1855 = vmatpush1.msra.mxu0 0.0
    %1856 = vmatprep.subr.mxu0 0.0
    %1857 = vmatpush1.msra.mxu0 0.0
    %1858 = vmatprep.mubr.f32.mxu0 0.0
    %1859 = vmatmul.mubr.f32.gmra.mrb[0].mxu0 %v1789
    %v1860 = vpop.f32.mrb[0].mxu0
    %v1861 = vadd.f32 %v1786, %v1860
    %v1862 = vpop.f32.mrb[0].mxu0
    %1863 = vmatprep.mubr.f32.mxu0 0.0
    %1864 = vmatmul.mubr.f32.gmra.mrb[0].mxu0 %v1792
    %v1865 = vpop.f32.mrb[0].mxu0
    %v1866 = vadd.f32 %v1786, %v1865
    %v1867 = vpop.f32.mrb[0].mxu0
    %1868 = vdwg.mxu0
    %v1869 = vmax.f32 %v1861, 0.0
    %v1870 = vmax.f32 %v1866, 0.0
    %v1871 = vld [vmem:[%s14] sm:$0xff]
    %v1872 = vld [vmem:[%s14 + $0x8] sm:$0xff]
    %v1873 = vld [vmem:[%s14 + $0x10] sm:$0xff]
    %v1874 = vld [vmem:[%s14 + $0x18] sm:$0xff]
    %v1875 = vld [vmem:[%s14 + $0x20] sm:$0xff]
    %v1876 = vld [vmem:[%s14 + $0x28] sm:$0xff]
    %v1877 = vld [vmem:[%s14 + $0x30] sm:$0xff]
    %v1878 = vld [vmem:[%s14 + $0x38] sm:$0xff]
    %v1879 = vld [vmem:[%s15] sm:$0x1]
    %v1881 = vlaneseq
    %v1882 = vshrl.u32 %v1881, 7
    %v1883 = vsub.s32 0, %v1882
    %v1884 = vrot.slane %v1879, %v1883
    %v1887 = vsel %vm559, %v1869, 0
    %v1890 = vsel %vm559, %v1870, 0
    %1892 = vmatprep.subr.mxu0 0.0
    %1893 = vmatpush1.msra.mxu0 %v1871
    %1894 = vmatprep.subr.mxu0 0.0
    %1895 = vmatpush1.msra.mxu0 %v1872
    %1896 = vmatprep.subr.mxu0 0.0
    %1897 = vmatpush1.msra.mxu0 %v1873
    %1898 = vmatprep.subr.mxu0 0.0
    %1899 = vmatpush1.msra.mxu0 %v1874
    %1900 = vmatprep.subr.mxu0 0.0
    %1901 = vmatpush1.msra.mxu0 %v1875
    %1902 = vmatprep.subr.mxu0 0.0
    %1903 = vmatpush1.msra.mxu0 %v1876
    %1904 = vmatprep.subr.mxu0 0.0
    %1905 = vmatpush1.msra.mxu0 %v1877
    %1906 = vmatprep.subr.mxu0 0.0
    %1907 = vmatpush1.msra.mxu0 %v1878
    %1908 = vmatprep.subr.mxu0 0.0
    %1909 = vmatpush1.msra.mxu0 0.0
    %1910 = vmatprep.subr.mxu0 0.0
    %1911 = vmatpush1.msra.mxu0 0.0
    %1912 = vmatprep.subr.mxu0 0.0
    %1913 = vmatpush1.msra.mxu0 0.0
    %1914 = vmatprep.subr.mxu0 0.0
    %1915 = vmatpush1.msra.mxu0 0.0
    %1916 = vmatprep.subr.mxu0 0.0
    %1917 = vmatpush1.msra.mxu0 0.0
    %1918 = vmatprep.subr.mxu0 0.0
    %1919 = vmatpush1.msra.mxu0 0.0
    %1920 = vmatprep.subr.mxu0 0.0
    %1921 = vmatpush1.msra.mxu0 0.0
    %1922 = vmatprep.subr.mxu0 0.0
    %1923 = vmatpush1.msra.mxu0 0.0
    %1924 = vmatprep.subr.mxu0 0.0
    %1925 = vmatpush1.msra.mxu0 0.0
    %1926 = vmatprep.subr.mxu0 0.0
    %1927 = vmatpush1.msra.mxu0 0.0
    %1928 = vmatprep.subr.mxu0 0.0
    %1929 = vmatpush1.msra.mxu0 0.0
    %1930 = vmatprep.subr.mxu0 0.0
    %1931 = vmatpush1.msra.mxu0 0.0
    %1932 = vmatprep.subr.mxu0 0.0
    %1933 = vmatpush1.msra.mxu0 0.0
    %1934 = vmatprep.subr.mxu0 0.0
    %1935 = vmatpush1.msra.mxu0 0.0
    %1936 = vmatprep.subr.mxu0 0.0
    %1937 = vmatpush1.msra.mxu0 0.0
    %1938 = vmatprep.subr.mxu0 0.0
    %1939 = vmatpush1.msra.mxu0 0.0
    %1940 = vmatprep.subr.mxu0 0.0
    %1941 = vmatpush1.msra.mxu0 0.0
    %1942 = vmatprep.subr.mxu0 0.0
    %1943 = vmatpush1.msra.mxu0 0.0
    %1944 = vmatprep.subr.mxu0 0.0
    %1945 = vmatpush1.msra.mxu0 0.0
    %1946 = vmatprep.subr.mxu0 0.0
    %1947 = vmatpush1.msra.mxu0 0.0
    %1948 = vmatprep.subr.mxu0 0.0
    %1949 = vmatpush1.msra.mxu0 0.0
    %1950 = vmatprep.subr.mxu0 0.0
    %1951 = vmatpush1.msra.mxu0 0.0
    %1952 = vmatprep.subr.mxu0 0.0
    %1953 = vmatpush1.msra.mxu0 0.0
    %1954 = vmatprep.subr.mxu0 0.0
    %1955 = vmatpush1.msra.mxu0 0.0
    %1956 = vmatprep.mubr.f32.mxu0 0.0
    %1957 = vmatmul.mubr.f32.gmra.mrb[0].mxu0 %v1887
    %v1958 = vpop.f32.mrb[0].mxu0
    %v1959 = vadd.f32 %v1884, %v1958
    %v1960 = vpop.f32.mrb[0].mxu0
    %1961 = vmatprep.mubr.f32.mxu0 0.0
    %1962 = vmatmul.mubr.f32.gmra.mrb[0].mxu0 %v1890
    %v1963 = vpop.f32.mrb[0].mxu0
    %v1964 = vadd.f32 %v1884, %v1963
    %v1965 = vpop.f32.mrb[0].mxu0
    %1966 = vdwg.mxu0
    %v1967 = vadd.f32 %v1737, %v1959
    %v1968 = vadd.f32 %v1738, %v1964
    %1969 = vst.msk [vmem:[#allocation22] sm:$0xff] %vm229, %v1967
    %1970 = vst.msk [vmem:[#allocation22 + $0x8] sm:$0xff] %vm229, %v1968
    // Predicated region
    $region130: #{tpu_custom_call.1} parent=1 // pred_check
      _
    $region131: #{tpu_custom_call.1} parent=1 // pred_check_branch
      %1972 = sbr.rel (0) target = $region133
    $region132: #{tpu_custom_call.1} parent=1 // pred_region
      %s1974 = ssub.s32 256, 256
      %1975 = vsyncadd [#allocation4], %s1974
      %s1976 = sshll.u32 [#allocation22], 4
      %s1977 = int_to_ptr.vmem [resolvable:$true] %s1976
      %1982 = dma.vmem_to_hbm [thread:$0]  %s1977, 256, %s20, [#allocation4], 128, 128, 8
    $region133: #{tpu_custom_call.1} parent=1 // pred_fallthru
      _
    // Predicated region
    $region134: #{tpu_custom_call.1} parent=1 // pred_check
      _
    $region135: #{tpu_custom_call.1} parent=1 // pred_check_branch
      %1984 = sbr.rel (0) target = $region137
    $region136: #{tpu_custom_call.1} parent=1 // pred_region
      %1985 = dma.done [#allocation4], 256
    $region137: #{tpu_custom_call.1} parent=1 // pred_fallthru
      _
    %1986 = vsyncpa [#allocation3], 1
    %1987 = vsyncpa [#allocation6], 1
    %1988 = vsyncpa [#allocation9], 1
    %1989 = vsyncpa [#allocation12], 1
    %1990 = vsyncpa [#allocation15], 1
    %1991 = vsyncpa [#allocation18], 1
    %1992 = vsyncpa [#allocation21], 1
    %1993 = vsyncpa [#allocation4], 1

</llo_original>
